<compile_context>
chip_gen: v6e
topology: v6e:2x2x1
jax: 0.10.0
libtpu: 0.0.40
codegen_flags: <defaults>
</compile_context>

<pallas_src>
import functools
import math

import jax
import jax.numpy as jnp
from jax.experimental import pallas as pl
from jax.experimental.pallas import tpu as pltpu

_SQRT_HALF = math.sqrt(0.5)
_NEG_INF = -1e30
_MIB = 1024 * 1024
_HAS_BUFFERED = hasattr(pl, "Buffered")


def _round_up(x, m):
    return (x + m - 1) // m * m


def _pad_to(a, shape):
    pads = [(0, t - s) for s, t in zip(a.shape, shape)]
    if any(p[1] for p in pads):
        return jnp.pad(a, pads)
    return a


def _vmem_capacity_bytes():
    """Physical VMEM per TensorCore; conservative fallback if the query fails."""
    try:
        return int(pltpu.get_tpu_info().vmem_capacity_bytes)
    except Exception:
        return 64 * _MIB  # v7x per-TC size (smallest of v5e/v6e/v7x)


def _vmem_bytes(t_tile, c_p, e_p, s_p, act_bytes, out_bytes, attn_bytes, mm_bytes,
                need_attn, inv_bufs):
    """Rough resident-VMEM estimate for one pipeline step."""
    b = 0
    # T-streamed blocks (double-buffered by the Pallas pipeline)
    b += 2 * t_tile * c_p * act_bytes                    # x
    b += 2 * t_tile * e_p * act_bytes                    # (target_embedding + b_in)
    b += 2 * t_tile * c_p * out_bytes                    # out
    if need_attn:
        b += 2 * t_tile * s_p * attn_bytes               # attn scores
    # grid-invariant operands (single-buffered when pl.Buffered is available)
    b += inv_bufs * e_p * s_p * mm_bytes                 # encoder keys
    b += inv_bufs * s_p * e_p * mm_bytes                 # encoder values
    b += inv_bufs * s_p * 4                              # additive mask
    b += inv_bufs * (c_p * e_p + e_p * c_p) * mm_bytes   # projection weights
    b += inv_bufs * c_p * 4                              # out-projection bias
    # f32 intermediates (y, scores/e/p, ctx, out)
    b += t_tile * (2 * e_p + 3 * s_p + c_p) * 4
    return b


def _attention_kernel(x_ref, tgt_ref, k_ref, v_ref, mask_ref,
                      wi_ref, wo_ref, bo_ref,
                      out_ref, *maybe_attn_ref, matmul_dtype):
    x = x_ref[...]                                                     # (tT, Cp)

    # in_projection: sqrt(0.5) is pre-folded into wi; (tgt + b_in)*sqrt(0.5) is
    # pre-computed on the host, so this is one matmul + one add.
    y = (jnp.dot(x.astype(matmul_dtype), wi_ref[...],
                 preferred_element_type=jnp.float32)
         + tgt_ref[...].astype(jnp.float32))                           # (tT, Ep)

    # attention scores: y @ K on the MXU (K already in matmul_dtype from the host)
    scores = jnp.dot(y.astype(matmul_dtype), k_ref[...],
                     preferred_element_type=jnp.float32)               # (tT, Sp)

    # additive padding mask: 0 for valid, -1e30 for padded source positions
    scores = scores + mask_ref[...]

    # softmax over source positions; reciprocal on the EUP + one Newton step
    m = jnp.max(scores, axis=-1, keepdims=True)
    e = jnp.exp(scores - m)
    denom = jnp.sum(e, axis=-1, keepdims=True)
    r = pl.reciprocal(denom, approx=True)
    r = r * (2.0 - denom * r)
    p = e * r                                                          # (tT, Sp)
    if maybe_attn_ref:
        maybe_attn_ref[0][...] = p.astype(maybe_attn_ref[0].dtype)

    # weighted sum of encoder values (V already in matmul_dtype)
    ctx = jnp.dot(p.astype(matmul_dtype), v_ref[...],
                  preferred_element_type=jnp.float32)                  # (tT, Ep)

    # out_projection + residual; sqrt(S)*sqrt(0.5) folded into wo, bo pre-scaled.
    out = (jnp.dot(ctx.astype(matmul_dtype), wo_ref[...],
                   preferred_element_type=jnp.float32)
           + bo_ref[...]
           + x.astype(jnp.float32) * _SQRT_HALF)                       # (tT, Cp)
    out_ref[...] = out.astype(out_ref.dtype)


def attention_layer(x, target_embedding, encoder_k, encoder_v, padding_mask,
                    w_in, b_in, w_out, b_out, *,
                    block_t=512, matmul_dtype=None, attn_dtype=None,
                    need_attn=True):
    """fconv AttentionLayer forward.

    x:(B,T,C) tgt:(B,T,E) encoder_k:(B,E,S) encoder_v:(B,S,E) padding_mask:(B,S) bool.
    w_in:(C,E) b_in:(E,) w_out:(E,C) b_out:(C,)  (weights pre-transposed vs torch Linear).
    Returns (out:(B,T,C), attn:(B,T,S) or None).
    """
    B, T, C = x.shape
    E = w_in.shape[1]
    S = encoder_k.shape[2]
    if matmul_dtype is None:
        matmul_dtype = jnp.bfloat16       # MXU-native on v5e/v6e/v7x; f32 accumulate
    if attn_dtype is None:
        attn_dtype = x.dtype

    # lane-dense padding: multiples of 128 on every lane dimension
    Cp = _round_up(C, 128)
    Ep = _round_up(E, 128)
    Sp = _round_up(S, 128)

    act_bytes = jnp.dtype(x.dtype).itemsize
    out_bytes = jnp.dtype(x.dtype).itemsize
    attn_bytes = jnp.dtype(attn_dtype).itemsize
    mm_bytes = jnp.dtype(matmul_dtype).itemsize

    # per-generation VMEM budget / scoped limit
    capacity = _vmem_capacity_bytes()
    budget = min(int(capacity * 0.75), capacity - 16 * _MIB)
    vmem_limit = max(capacity - 8 * _MIB, 32 * _MIB)
    inv_bufs = 1 if _HAS_BUFFERED else 2

    # largest T tile (multiple of 8) that fits the per-generation VMEM budget
    t_tile = max(8, min(_round_up(block_t, 8), _round_up(T, 8)))
    while (t_tile > 8 and
           _vmem_bytes(t_tile, Cp, Ep, Sp, act_bytes, out_bytes, attn_bytes,
                       mm_bytes, need_attn, inv_bufs) > budget):
        t_tile = max(8, _round_up(t_tile // 2, 8))
    if _vmem_bytes(t_tile, Cp, Ep, Sp, act_bytes, out_bytes, attn_bytes,
                   mm_bytes, need_attn, inv_bufs) > budget:
        # TODO(synk): add an S-tiled online-softmax (flash-style) inner loop so very
        # large E*S encoder contexts fit v7x's 64 MiB VMEM instead of failing here.
        raise ValueError(
            f"encoder K/V working set (E={E}, S={S}, dtype={jnp.dtype(matmul_dtype).name}) "
            f"does not fit the VMEM budget ({budget // _MIB} MiB) even at t_tile=8")

    n_t = pl.cdiv(T, t_tile)   # no host-side T padding; Pallas masks the last block

    # ---- host-side prep (one-time, outside the hot loop) ----
    x_p = _pad_to(x, (B, T, Cp))
    # fold b_in and sqrt(0.5) into the target-embedding stream
    tgt_p = _pad_to(((target_embedding.astype(jnp.float32) + b_in.astype(jnp.float32))
                     * _SQRT_HALF).astype(x.dtype), (B, T, Ep))
    # K/V cast to the MXU dtype on the host (halves DMA + VMEM residency for bf16)
    k_p = _pad_to(encoder_k, (B, Ep, Sp)).astype(matmul_dtype)
    v_p = _pad_to(encoder_v, (B, Sp, Ep)).astype(matmul_dtype)

    pad = padding_mask
    if Sp > S:
        pad = jnp.concatenate([pad, jnp.ones((B, Sp - S), dtype=pad.dtype)], axis=1)
    add_mask = jnp.where(pad, jnp.float32(_NEG_INF), jnp.float32(0.0)).reshape(B, 1, Sp)

    # fold sqrt(0.5) into W_in; fold `s*sqrt(1/s)` (== sqrt(S)) and sqrt(0.5) into W_out/b_out
    ctx_scale = math.sqrt(float(S)) * _SQRT_HALF
    w_in_p = _pad_to(w_in.astype(jnp.float32) * _SQRT_HALF, (Cp, Ep)).astype(matmul_dtype)
    w_out_p = _pad_to(w_out.astype(jnp.float32) * ctx_scale, (Ep, Cp)).astype(matmul_dtype)
    b_out_p = _pad_to((b_out.astype(jnp.float32) * _SQRT_HALF).reshape(1, C), (1, Cp))

    kernel = functools.partial(_attention_kernel, matmul_dtype=matmul_dtype)

    def _run(single_buffer):
        def inv_spec(block_shape, index_map):
            # grid-invariant operand -> single buffer (no double-buffer re-DMA/footprint)
            if single_buffer:
                return pl.BlockSpec(block_shape, index_map, pipeline_mode=pl.Buffered(1))
            return pl.BlockSpec(block_shape, index_map)

        in_specs = [
            pl.BlockSpec((None, t_tile, Cp), lambda b, t: (b, t, 0)),   # x
            pl.BlockSpec((None, t_tile, Ep), lambda b, t: (b, t, 0)),   # tgt (+ b_in)
            inv_spec((None, Ep, Sp), lambda b, t: (b, 0, 0)),           # encoder K
            inv_spec((None, Sp, Ep), lambda b, t: (b, 0, 0)),           # encoder V
            inv_spec((None, 1, Sp), lambda b, t: (b, 0, 0)),            # additive mask
            inv_spec((Cp, Ep), lambda b, t: (0, 0)),                    # W_in (scaled)
            inv_spec((Ep, Cp), lambda b, t: (0, 0)),                    # W_out (scaled)
            inv_spec((1, Cp), lambda b, t: (0, 0)),                     # b_out (scaled)
        ]
        out_spec_x = pl.BlockSpec((None, t_tile, Cp), lambda b, t: (b, t, 0))
        if need_attn:
            out_shape = (jax.ShapeDtypeStruct((B, T, Cp), x.dtype),
                         jax.ShapeDtypeStruct((B, T, Sp), attn_dtype))
            out_specs = (out_spec_x,
                         pl.BlockSpec((None, t_tile, Sp), lambda b, t: (b, t, 0)))
        else:
            out_shape = jax.ShapeDtypeStruct((B, T, Cp), x.dtype)
            out_specs = out_spec_x

        return pl.pallas_call(
            kernel,
            out_shape=out_shape,
            grid_spec=pltpu.PrefetchScalarGridSpec(
                num_scalar_prefetch=0,
                # T tiles innermost: K/V block index is constant across them -> resident
                grid=(B, n_t),
                in_specs=in_specs,
                out_specs=out_specs,
            ),
            compiler_params=pltpu.CompilerParams(
                dimension_semantics=("parallel", "parallel"),
                vmem_limit_bytes=vmem_limit),
        )(x_p, tgt_p, k_p, v_p, add_mask, w_in_p, w_out_p, b_out_p)

    use_single = _HAS_BUFFERED
    try:
        result = _run(use_single)
    except Exception:
        if not use_single:
            raise
        result = _run(False)    # fallback: plain double-buffered specs

    if need_attn:
        out_p, attn_p = result
        attn = attn_p if Sp == S else attn_p[:, :, :S]
    else:
        out_p, attn = result, None
    out = out_p if Cp == C else out_p[:, :, :C]
    return out, attn


def _reference(x, tgt, enc_k, enc_v, pad, w_in, b_in, w_out, b_out):
    """Pure-JAX reference mirroring the PyTorch forward."""
    residual = x
    y = (jnp.einsum('btc,ce->bte', x, w_in) + b_in + tgt) * math.sqrt(0.5)
    sc = jnp.einsum('bte,bes->bts', y, enc_k)
    sc = jnp.where(pad[:, None, :], -jnp.inf, sc)
    p = jax.nn.softmax(sc, axis=-1)
    ctx = jnp.einsum('bts,bse->bte', p, enc_v)
    s = enc_v.shape[1]
    ctx = ctx * (s * math.sqrt(1.0 / s))
    out = (jnp.einsum('bte,ec->btc', ctx, w_out) + b_out + residual) * math.sqrt(0.5)
    return out, p


if __name__ == "__main__":
    B, T, S = 2, 8, 16
    conv_channels, embed_dim = 4, 32

    key = jax.random.PRNGKey(0)
    keys = jax.random.split(key, 8)

    x = jax.random.normal(keys[0], (B, T, conv_channels), dtype=jnp.float32)
    target_embedding = jax.random.normal(keys[1], (B, T, embed_dim), dtype=jnp.float32)
    encoder_k = jax.random.normal(keys[2], (B, embed_dim, S), dtype=jnp.float32)
    encoder_v = jax.random.normal(keys[3], (B, S, embed_dim), dtype=jnp.float32)
    # padding mask: True = padded position; keep every row at least partially unpadded
    padding_mask = jnp.arange(S)[None, :] >= jnp.array([[S - 3], [S]])   # (B, S) bool

    # weight-normalized-linear-style init (weights pre-transposed to (in, out));
    # biases nonzero here to exercise the host-side folding.
    w_in = jax.random.normal(keys[4], (conv_channels, embed_dim), dtype=jnp.float32) \
        * math.sqrt(1.0 / conv_channels)
    b_in = 0.1 * jax.random.normal(keys[5], (embed_dim,), dtype=jnp.float32)
    w_out = jax.random.normal(keys[6], (embed_dim, conv_channels), dtype=jnp.float32) \
        * math.sqrt(1.0 / embed_dim)
    b_out = 0.1 * jax.random.normal(keys[7], (conv_channels,), dtype=jnp.float32)

    ref_out, ref_attn = _reference(x, target_embedding, encoder_k, encoder_v,
                                   padding_mask, w_in, b_in, w_out, b_out)

    # exact f32 MXU path: tight check
    out, attn = attention_layer(x, target_embedding, encoder_k, encoder_v,
                                padding_mask, w_in, b_in, w_out, b_out,
                                matmul_dtype=jnp.float32)
    jax.block_until_ready((out, attn))
    assert jnp.allclose(out, ref_out, atol=1e-4, rtol=1e-4), "output mismatch (f32)"
    assert jnp.allclose(attn, ref_attn, atol=1e-4, rtol=1e-4), "attn mismatch (f32)"

    # default path (bf16 MXU inputs, f32 accumulation): loose sanity check
    out_bf, attn_bf = attention_layer(x, target_embedding, encoder_k, encoder_v,
                                      padding_mask, w_in, b_in, w_out, b_out)
    jax.block_until_ready((out_bf, attn_bf))
    assert jnp.allclose(out_bf, ref_out, atol=1e-1, rtol=1e-1), "output mismatch (bf16)"
    assert jnp.allclose(attn_bf, ref_attn, atol=1e-1, rtol=1e-1), "attn mismatch (bf16)"

    # attn writeback disabled (removes the dominant HBM stream when unused downstream)
    out_na, attn_na = attention_layer(x, target_embedding, encoder_k, encoder_v,
                                      padding_mask, w_in, b_in, w_out, b_out,
                                      need_attn=False)
    jax.block_until_ready(out_na)
    assert attn_na is None
    assert jnp.allclose(out_na, ref_out, atol=1e-1, rtol=1e-1), "output mismatch (no-attn)"

    print("KERNEL_OK")
</pallas_src>

<mosaic_0001>
module attributes {stable_mosaic.version = 11 : i64} {
  func.func @_attention_kernel(%arg0: i32, %arg1: i32, %arg2: memref<1x8x128xf32, #tpu.memory_space<vmem>>, %arg3: memref<1x8x128xf32, #tpu.memory_space<vmem>>, %arg4: memref<1x128x128xf32, #tpu.memory_space<vmem>>, %arg5: memref<1x128x128xf32, #tpu.memory_space<vmem>>, %arg6: memref<1x1x128xf32, #tpu.memory_space<vmem>>, %arg7: memref<128x128xf32, #tpu.memory_space<vmem>>, %arg8: memref<128x128xf32, #tpu.memory_space<vmem>>, %arg9: memref<1x128xf32, #tpu.memory_space<vmem>>, %arg10: memref<1x8x128xf32, #tpu.memory_space<vmem>>, %arg11: memref<1x8x128xf32, #tpu.memory_space<vmem>>) attributes {dimension_semantics = [#tpu.dimension_semantics<parallel>, #tpu.dimension_semantics<parallel>], iteration_bounds = array<i64: 2, 1>, scalar_prefetch = 0 : i64, scratch_operands = 0 : i64, tpu.core_type = #tpu.core_type<tc>, window_params = [{transform_indices = @transform_0, window_bounds = array<i64: 1, 8, 128>}, {transform_indices = @transform_1, window_bounds = array<i64: 1, 8, 128>}, {pipeline_mode = #tpu.pipeline_mode<synchronous>, transform_indices = @transform_2, window_bounds = array<i64: 1, 128, 128>}, {pipeline_mode = #tpu.pipeline_mode<synchronous>, transform_indices = @transform_3, window_bounds = array<i64: 1, 128, 128>}, {pipeline_mode = #tpu.pipeline_mode<synchronous>, transform_indices = @transform_4, window_bounds = array<i64: 1, 1, 128>}, {pipeline_mode = #tpu.pipeline_mode<synchronous>, transform_indices = @transform_5, window_bounds = array<i64: 128, 128>}, {pipeline_mode = #tpu.pipeline_mode<synchronous>, transform_indices = @transform_6, window_bounds = array<i64: 128, 128>}, {pipeline_mode = #tpu.pipeline_mode<synchronous>, transform_indices = @transform_7, window_bounds = array<i64: 1, 128>}, {transform_indices = @transform_8, window_bounds = array<i64: 1, 8, 128>}, {transform_indices = @transform_9, window_bounds = array<i64: 1, 8, 128>}]} {
    %c0 = arith.constant 0 : index
    %c0_0 = arith.constant 0 : index
    %c0_1 = arith.constant 0 : index
    %0 = vector.load %arg2[%c0, %c0_0, %c0_1] : memref<1x8x128xf32, #tpu.memory_space<vmem>>, vector<1x8x128xf32>
    %1 = vector.shape_cast %0 : vector<1x8x128xf32> to vector<8x128xf32>
    %c0_2 = arith.constant 0 : index
    %c0_3 = arith.constant 0 : index
    %2 = vector.load %arg7[%c0_2, %c0_3] : memref<128x128xf32, #tpu.memory_space<vmem>>, vector<128x128xf32>
    %cst = arith.constant dense<0.000000e+00> : vector<8x128xf32>
    %3 = tpu.matmul %1, %2, %cst {dimension_numbers = #tpu.dot_dimension_numbers<[1], [0], [0], [1], [0, 0, 1, 1], [], []>} : vector<8x128xf32>, vector<128x128xf32>, vector<8x128xf32> -> vector<8x128xf32>
    %c0_4 = arith.constant 0 : index
    %c0_5 = arith.constant 0 : index
    %c0_6 = arith.constant 0 : index
    %4 = vector.load %arg3[%c0_4, %c0_5, %c0_6] : memref<1x8x128xf32, #tpu.memory_space<vmem>>, vector<1x8x128xf32>
    %5 = vector.shape_cast %4 : vector<1x8x128xf32> to vector<8x128xf32>
    %6 = arith.addf %3, %5 : vector<8x128xf32>
    %c0_7 = arith.constant 0 : index
    %c0_8 = arith.constant 0 : index
    %c0_9 = arith.constant 0 : index
    %7 = vector.load %arg4[%c0_7, %c0_8, %c0_9] : memref<1x128x128xf32, #tpu.memory_space<vmem>>, vector<1x128x128xf32>
    %8 = vector.shape_cast %7 : vector<1x128x128xf32> to vector<128x128xf32>
    %cst_10 = arith.constant dense<0.000000e+00> : vector<8x128xf32>
    %9 = tpu.matmul %6, %8, %cst_10 {dimension_numbers = #tpu.dot_dimension_numbers<[1], [0], [0], [1], [0, 0, 1, 1], [], []>} : vector<8x128xf32>, vector<128x128xf32>, vector<8x128xf32> -> vector<8x128xf32>
    %c0_11 = arith.constant 0 : index
    %c0_12 = arith.constant 0 : index
    %c0_13 = arith.constant 0 : index
    %10 = vector.load %arg6[%c0_11, %c0_12, %c0_13] : memref<1x1x128xf32, #tpu.memory_space<vmem>>, vector<1x1x128xf32>
    %11 = vector.shape_cast %10 : vector<1x1x128xf32> to vector<1x128xf32>
    %12 = vector.broadcast %11 : vector<1x128xf32> to vector<8x128xf32>
    %13 = arith.addf %9, %12 : vector<8x128xf32>
    %cst_14 = arith.constant dense<0xFF800000> : vector<8xf32>
    %14 = vector.multi_reduction <maximumf>, %13, %cst_14 [1] : vector<8x128xf32> to vector<8xf32>
    %15 = vector.shape_cast %14 : vector<8xf32> to vector<8x1xf32>
    %16 = vector.broadcast %15 : vector<8x1xf32> to vector<8x128xf32>
    %17 = arith.subf %13, %16 : vector<8x128xf32>
    %18 = math.exp %17 : vector<8x128xf32>
    %cst_15 = arith.constant dense<0.000000e+00> : vector<8xf32>
    %19 = vector.multi_reduction <add>, %18, %cst_15 [1] : vector<8x128xf32> to vector<8xf32>
    %20 = vector.shape_cast %19 : vector<8xf32> to vector<8x1xf32>
    %21 = tpu.reciprocal %20 {approx = true} : vector<8x1xf32> -> vector<8x1xf32>
    %22 = arith.mulf %20, %21 : vector<8x1xf32>
    %cst_16 = arith.constant 2.000000e+00 : f32
    %23 = vector.broadcast %cst_16 : f32 to vector<8x1xf32>
    %24 = arith.subf %23, %22 : vector<8x1xf32>
    %25 = arith.mulf %21, %24 : vector<8x1xf32>
    %26 = vector.broadcast %25 : vector<8x1xf32> to vector<8x128xf32>
    %27 = arith.mulf %18, %26 : vector<8x128xf32>
    %c0_17 = arith.constant 0 : index
    %c0_18 = arith.constant 0 : index
    %c0_19 = arith.constant 0 : index
    %28 = vector.load %arg11[%c0_17, %c0_18, %c0_19] : memref<1x8x128xf32, #tpu.memory_space<vmem>>, vector<1x8x128xf32>
    %29 = vector.shape_cast %28 : vector<1x8x128xf32> to vector<8x128xf32>
    %30 = vector.shape_cast %27 : vector<8x128xf32> to vector<1x8x128xf32>
    tpu.vector_store %arg11[%c0_17, %c0_18, %c0_19], %30 {strides = array<i32>} : memref<1x8x128xf32, #tpu.memory_space<vmem>>, vector<1x8x128xf32>,
    %c0_20 = arith.constant 0 : index
    %c0_21 = arith.constant 0 : index
    %c0_22 = arith.constant 0 : index
    %31 = vector.load %arg5[%c0_20, %c0_21, %c0_22] : memref<1x128x128xf32, #tpu.memory_space<vmem>>, vector<1x128x128xf32>
    %32 = vector.shape_cast %31 : vector<1x128x128xf32> to vector<128x128xf32>
    %cst_23 = arith.constant dense<0.000000e+00> : vector<8x128xf32>
    %33 = tpu.matmul %27, %32, %cst_23 {dimension_numbers = #tpu.dot_dimension_numbers<[1], [0], [0], [1], [0, 0, 1, 1], [], []>} : vector<8x128xf32>, vector<128x128xf32>, vector<8x128xf32> -> vector<8x128xf32>
    %c0_24 = arith.constant 0 : index
    %c0_25 = arith.constant 0 : index
    %34 = vector.load %arg8[%c0_24, %c0_25] : memref<128x128xf32, #tpu.memory_space<vmem>>, vector<128x128xf32>
    %cst_26 = arith.constant dense<0.000000e+00> : vector<8x128xf32>
    %35 = tpu.matmul %33, %34, %cst_26 {dimension_numbers = #tpu.dot_dimension_numbers<[1], [0], [0], [1], [0, 0, 1, 1], [], []>} : vector<8x128xf32>, vector<128x128xf32>, vector<8x128xf32> -> vector<8x128xf32>
    %c0_27 = arith.constant 0 : index
    %c0_28 = arith.constant 0 : index
    %36 = vector.load %arg9[%c0_27, %c0_28] : memref<1x128xf32, #tpu.memory_space<vmem>>, vector<1x128xf32>
    %37 = vector.broadcast %36 : vector<1x128xf32> to vector<8x128xf32>
    %38 = arith.addf %35, %37 : vector<8x128xf32>
    %cst_29 = arith.constant 0.707106769 : f32
    %39 = vector.broadcast %cst_29 : f32 to vector<8x128xf32>
    %40 = arith.mulf %1, %39 : vector<8x128xf32>
    %41 = arith.addf %38, %40 : vector<8x128xf32>
    %c0_30 = arith.constant 0 : index
    %c0_31 = arith.constant 0 : index
    %c0_32 = arith.constant 0 : index
    %42 = vector.load %arg10[%c0_30, %c0_31, %c0_32] : memref<1x8x128xf32, #tpu.memory_space<vmem>>, vector<1x8x128xf32>
    %43 = vector.shape_cast %42 : vector<1x8x128xf32> to vector<8x128xf32>
    %44 = vector.shape_cast %41 : vector<8x128xf32> to vector<1x8x128xf32>
    tpu.vector_store %arg10[%c0_30, %c0_31, %c0_32], %44 {strides = array<i32>} : memref<1x8x128xf32, #tpu.memory_space<vmem>>, vector<1x8x128xf32>,
    return
  }
  func.func @transform_0(%arg0: i32, %arg1: i32) -> (i32, i32, i32) {
    %c0_i32 = arith.constant 0 : i32
    %c0_i32_0 = arith.constant 0 : i32
    return %arg0, %arg1, %c0_i32 : i32, i32, i32
  }
  func.func @transform_1(%arg0: i32, %arg1: i32) -> (i32, i32, i32) {
    %c0_i32 = arith.constant 0 : i32
    %c0_i32_0 = arith.constant 0 : i32
    return %arg0, %arg1, %c0_i32 : i32, i32, i32
  }
  func.func @transform_2(%arg0: i32, %arg1: i32) -> (i32, i32, i32) {
    %c0_i32 = arith.constant 0 : i32
    %c0_i32_0 = arith.constant 0 : i32
    %c0_i32_1 = arith.constant 0 : i32
    return %arg0, %c0_i32, %c0_i32_0 : i32, i32, i32
  }
  func.func @transform_3(%arg0: i32, %arg1: i32) -> (i32, i32, i32) {
    %c0_i32 = arith.constant 0 : i32
    %c0_i32_0 = arith.constant 0 : i32
    %c0_i32_1 = arith.constant 0 : i32
    return %arg0, %c0_i32, %c0_i32_0 : i32, i32, i32
  }
  func.func @transform_4(%arg0: i32, %arg1: i32) -> (i32, i32, i32) {
    %c0_i32 = arith.constant 0 : i32
    %c0_i32_0 = arith.constant 0 : i32
    %c0_i32_1 = arith.constant 0 : i32
    return %arg0, %c0_i32, %c0_i32_0 : i32, i32, i32
  }
  func.func @transform_5(%arg0: i32, %arg1: i32) -> (i32, i32) {
    %c0_i32 = arith.constant 0 : i32
    %c0_i32_0 = arith.constant 0 : i32
    %c0_i32_1 = arith.constant 0 : i32
    return %c0_i32, %c0_i32_0 : i32, i32
  }
  func.func @transform_6(%arg0: i32, %arg1: i32) -> (i32, i32) {
    %c0_i32 = arith.constant 0 : i32
    %c0_i32_0 = arith.constant 0 : i32
    %c0_i32_1 = arith.constant 0 : i32
    return %c0_i32, %c0_i32_0 : i32, i32
  }
  func.func @transform_7(%arg0: i32, %arg1: i32) -> (i32, i32) {
    %c0_i32 = arith.constant 0 : i32
    %c0_i32_0 = arith.constant 0 : i32
    %c0_i32_1 = arith.constant 0 : i32
    return %c0_i32, %c0_i32_0 : i32, i32
  }
  func.func @transform_8(%arg0: i32, %arg1: i32) -> (i32, i32, i32) {
    %c0_i32 = arith.constant 0 : i32
    %c0_i32_0 = arith.constant 0 : i32
    return %arg0, %arg1, %c0_i32 : i32, i32, i32
  }
  func.func @transform_9(%arg0: i32, %arg1: i32) -> (i32, i32, i32) {
    %c0_i32 = arith.constant 0 : i32
    %c0_i32_0 = arith.constant 0 : i32
    return %arg0, %arg1, %c0_i32 : i32, i32, i32
  }
}

module attributes {stable_mosaic.version = 11 : i64} {
  func.func @_attention_kernel(%arg0: i32, %arg1: i32, %arg2: memref<1x8x128xf32, #tpu.memory_space<vmem>>, %arg3: memref<1x8x128xf32, #tpu.memory_space<vmem>>, %arg4: memref<1x128x128xf32, #tpu.memory_space<vmem>>, %arg5: memref<1x128x128xf32, #tpu.memory_space<vmem>>, %arg6: memref<1x1x128xf32, #tpu.memory_space<vmem>>, %arg7: memref<128x128xf32, #tpu.memory_space<vmem>>, %arg8: memref<128x128xf32, #tpu.memory_space<vmem>>, %arg9: memref<1x128xf32, #tpu.memory_space<vmem>>, %arg10: memref<1x8x128xf32, #tpu.memory_space<vmem>>, %arg11: memref<1x8x128xf32, #tpu.memory_space<vmem>>) attributes {dimension_semantics = [#tpu.dimension_semantics<parallel>, #tpu.dimension_semantics<parallel>], iteration_bounds = array<i64: 2, 1>, scalar_prefetch = 0 : i64, scratch_operands = 0 : i64, tpu.core_type = #tpu.core_type<tc>, window_params = [{transform_indices = @transform_0, window_bounds = array<i64: 1, 8, 128>}, {transform_indices = @transform_1, window_bounds = array<i64: 1, 8, 128>}, {transform_indices = @transform_2, window_bounds = array<i64: 1, 128, 128>}, {transform_indices = @transform_3, window_bounds = array<i64: 1, 128, 128>}, {transform_indices = @transform_4, window_bounds = array<i64: 1, 1, 128>}, {pipeline_mode = #tpu.pipeline_mode<synchronous>, transform_indices = @transform_5, window_bounds = array<i64: 128, 128>}, {pipeline_mode = #tpu.pipeline_mode<synchronous>, transform_indices = @transform_6, window_bounds = array<i64: 128, 128>}, {pipeline_mode = #tpu.pipeline_mode<synchronous>, transform_indices = @transform_7, window_bounds = array<i64: 1, 128>}, {transform_indices = @transform_8, window_bounds = array<i64: 1, 8, 128>}, {transform_indices = @transform_9, window_bounds = array<i64: 1, 8, 128>}]} {
    %c0 = arith.constant 0 : index
    %c0_0 = arith.constant 0 : index
    %c0_1 = arith.constant 0 : index
    %0 = vector.load %arg2[%c0, %c0_0, %c0_1] : memref<1x8x128xf32, #tpu.memory_space<vmem>>, vector<1x8x128xf32>
    %1 = vector.shape_cast %0 : vector<1x8x128xf32> to vector<8x128xf32>
    %c0_2 = arith.constant 0 : index
    %c0_3 = arith.constant 0 : index
    %2 = vector.load %arg7[%c0_2, %c0_3] : memref<128x128xf32, #tpu.memory_space<vmem>>, vector<128x128xf32>
    %cst = arith.constant dense<0.000000e+00> : vector<8x128xf32>
    %3 = tpu.matmul %1, %2, %cst {dimension_numbers = #tpu.dot_dimension_numbers<[1], [0], [0], [1], [0, 0, 1, 1], [], []>} : vector<8x128xf32>, vector<128x128xf32>, vector<8x128xf32> -> vector<8x128xf32>
    %c0_4 = arith.constant 0 : index
    %c0_5 = arith.constant 0 : index
    %c0_6 = arith.constant 0 : index
    %4 = vector.load %arg3[%c0_4, %c0_5, %c0_6] : memref<1x8x128xf32, #tpu.memory_space<vmem>>, vector<1x8x128xf32>
    %5 = vector.shape_cast %4 : vector<1x8x128xf32> to vector<8x128xf32>
    %6 = arith.addf %3, %5 : vector<8x128xf32>
    %c0_7 = arith.constant 0 : index
    %c0_8 = arith.constant 0 : index
    %c0_9 = arith.constant 0 : index
    %7 = vector.load %arg4[%c0_7, %c0_8, %c0_9] : memref<1x128x128xf32, #tpu.memory_space<vmem>>, vector<1x128x128xf32>
    %8 = vector.shape_cast %7 : vector<1x128x128xf32> to vector<128x128xf32>
    %cst_10 = arith.constant dense<0.000000e+00> : vector<8x128xf32>
    %9 = tpu.matmul %6, %8, %cst_10 {dimension_numbers = #tpu.dot_dimension_numbers<[1], [0], [0], [1], [0, 0, 1, 1], [], []>} : vector<8x128xf32>, vector<128x128xf32>, vector<8x128xf32> -> vector<8x128xf32>
    %c0_11 = arith.constant 0 : index
    %c0_12 = arith.constant 0 : index
    %c0_13 = arith.constant 0 : index
    %10 = vector.load %arg6[%c0_11, %c0_12, %c0_13] : memref<1x1x128xf32, #tpu.memory_space<vmem>>, vector<1x1x128xf32>
    %11 = vector.shape_cast %10 : vector<1x1x128xf32> to vector<1x128xf32>
    %12 = vector.broadcast %11 : vector<1x128xf32> to vector<8x128xf32>
    %13 = arith.addf %9, %12 : vector<8x128xf32>
    %cst_14 = arith.constant dense<0xFF800000> : vector<8xf32>
    %14 = vector.multi_reduction <maximumf>, %13, %cst_14 [1] : vector<8x128xf32> to vector<8xf32>
    %15 = vector.shape_cast %14 : vector<8xf32> to vector<8x1xf32>
    %16 = vector.broadcast %15 : vector<8x1xf32> to vector<8x128xf32>
    %17 = arith.subf %13, %16 : vector<8x128xf32>
    %18 = math.exp %17 : vector<8x128xf32>
    %cst_15 = arith.constant dense<0.000000e+00> : vector<8xf32>
    %19 = vector.multi_reduction <add>, %18, %cst_15 [1] : vector<8x128xf32> to vector<8xf32>
    %20 = vector.shape_cast %19 : vector<8xf32> to vector<8x1xf32>
    %21 = tpu.reciprocal %20 {approx = true} : vector<8x1xf32> -> vector<8x1xf32>
    %22 = arith.mulf %20, %21 : vector<8x1xf32>
    %cst_16 = arith.constant 2.000000e+00 : f32
    %23 = vector.broadcast %cst_16 : f32 to vector<8x1xf32>
    %24 = arith.subf %23, %22 : vector<8x1xf32>
    %25 = arith.mulf %21, %24 : vector<8x1xf32>
    %26 = vector.broadcast %25 : vector<8x1xf32> to vector<8x128xf32>
    %27 = arith.mulf %18, %26 : vector<8x128xf32>
    %c0_17 = arith.constant 0 : index
    %c0_18 = arith.constant 0 : index
    %c0_19 = arith.constant 0 : index
    %28 = vector.load %arg11[%c0_17, %c0_18, %c0_19] : memref<1x8x128xf32, #tpu.memory_space<vmem>>, vector<1x8x128xf32>
    %29 = vector.shape_cast %28 : vector<1x8x128xf32> to vector<8x128xf32>
    %30 = vector.shape_cast %27 : vector<8x128xf32> to vector<1x8x128xf32>
    tpu.vector_store %arg11[%c0_17, %c0_18, %c0_19], %30 {strides = array<i32>} : memref<1x8x128xf32, #tpu.memory_space<vmem>>, vector<1x8x128xf32>,
    %c0_20 = arith.constant 0 : index
    %c0_21 = arith.constant 0 : index
    %c0_22 = arith.constant 0 : index
    %31 = vector.load %arg5[%c0_20, %c0_21, %c0_22] : memref<1x128x128xf32, #tpu.memory_space<vmem>>, vector<1x128x128xf32>
    %32 = vector.shape_cast %31 : vector<1x128x128xf32> to vector<128x128xf32>
    %cst_23 = arith.constant dense<0.000000e+00> : vector<8x128xf32>
    %33 = tpu.matmul %27, %32, %cst_23 {dimension_numbers = #tpu.dot_dimension_numbers<[1], [0], [0], [1], [0, 0, 1, 1], [], []>} : vector<8x128xf32>, vector<128x128xf32>, vector<8x128xf32> -> vector<8x128xf32>
    %c0_24 = arith.constant 0 : index
    %c0_25 = arith.constant 0 : index
    %34 = vector.load %arg8[%c0_24, %c0_25] : memref<128x128xf32, #tpu.memory_space<vmem>>, vector<128x128xf32>
    %cst_26 = arith.constant dense<0.000000e+00> : vector<8x128xf32>
    %35 = tpu.matmul %33, %34, %cst_26 {dimension_numbers = #tpu.dot_dimension_numbers<[1], [0], [0], [1], [0, 0, 1, 1], [], []>} : vector<8x128xf32>, vector<128x128xf32>, vector<8x128xf32> -> vector<8x128xf32>
    %c0_27 = arith.constant 0 : index
    %c0_28 = arith.constant 0 : index
    %36 = vector.load %arg9[%c0_27, %c0_28] : memref<1x128xf32, #tpu.memory_space<vmem>>, vector<1x128xf32>
    %37 = vector.broadcast %36 : vector<1x128xf32> to vector<8x128xf32>
    %38 = arith.addf %35, %37 : vector<8x128xf32>
    %cst_29 = arith.constant 0.707106769 : f32
    %39 = vector.broadcast %cst_29 : f32 to vector<8x128xf32>
    %40 = arith.mulf %1, %39 : vector<8x128xf32>
    %41 = arith.addf %38, %40 : vector<8x128xf32>
    %c0_30 = arith.constant 0 : index
    %c0_31 = arith.constant 0 : index
    %c0_32 = arith.constant 0 : index
    %42 = vector.load %arg10[%c0_30, %c0_31, %c0_32] : memref<1x8x128xf32, #tpu.memory_space<vmem>>, vector<1x8x128xf32>
    %43 = vector.shape_cast %42 : vector<1x8x128xf32> to vector<8x128xf32>
    %44 = vector.shape_cast %41 : vector<8x128xf32> to vector<1x8x128xf32>
    tpu.vector_store %arg10[%c0_30, %c0_31, %c0_32], %44 {strides = array<i32>} : memref<1x8x128xf32, #tpu.memory_space<vmem>>, vector<1x8x128xf32>,
    return
  }
  func.func @transform_0(%arg0: i32, %arg1: i32) -> (i32, i32, i32) {
    %c0_i32 = arith.constant 0 : i32
    %c0_i32_0 = arith.constant 0 : i32
    return %arg0, %arg1, %c0_i32 : i32, i32, i32
  }
  func.func @transform_1(%arg0: i32, %arg1: i32) -> (i32, i32, i32) {
    %c0_i32 = arith.constant 0 : i32
    %c0_i32_0 = arith.constant 0 : i32
    return %arg0, %arg1, %c0_i32 : i32, i32, i32
  }
  func.func @transform_2(%arg0: i32, %arg1: i32) -> (i32, i32, i32) {
    %c0_i32 = arith.constant 0 : i32
    %c0_i32_0 = arith.constant 0 : i32
    %c0_i32_1 = arith.constant 0 : i32
    return %arg0, %c0_i32, %c0_i32_0 : i32, i32, i32
  }
  func.func @transform_3(%arg0: i32, %arg1: i32) -> (i32, i32, i32) {
    %c0_i32 = arith.constant 0 : i32
    %c0_i32_0 = arith.constant 0 : i32
    %c0_i32_1 = arith.constant 0 : i32
    return %arg0, %c0_i32, %c0_i32_0 : i32, i32, i32
  }
  func.func @transform_4(%arg0: i32, %arg1: i32) -> (i32, i32, i32) {
    %c0_i32 = arith.constant 0 : i32
    %c0_i32_0 = arith.constant 0 : i32
    %c0_i32_1 = arith.constant 0 : i32
    return %arg0, %c0_i32, %c0_i32_0 : i32, i32, i32
  }
  func.func @transform_5(%arg0: i32, %arg1: i32) -> (i32, i32) {
    %c0_i32 = arith.constant 0 : i32
    %c0_i32_0 = arith.constant 0 : i32
    %c0_i32_1 = arith.constant 0 : i32
    return %c0_i32, %c0_i32_0 : i32, i32
  }
  func.func @transform_6(%arg0: i32, %arg1: i32) -> (i32, i32) {
    %c0_i32 = arith.constant 0 : i32
    %c0_i32_0 = arith.constant 0 : i32
    %c0_i32_1 = arith.constant 0 : i32
    return %c0_i32, %c0_i32_0 : i32, i32
  }
  func.func @transform_7(%arg0: i32, %arg1: i32) -> (i32, i32) {
    %c0_i32 = arith.constant 0 : i32
    %c0_i32_0 = arith.constant 0 : i32
    %c0_i32_1 = arith.constant 0 : i32
    return %c0_i32, %c0_i32_0 : i32, i32
  }
  func.func @transform_8(%arg0: i32, %arg1: i32) -> (i32, i32, i32) {
    %c0_i32 = arith.constant 0 : i32
    %c0_i32_0 = arith.constant 0 : i32
    return %arg0, %arg1, %c0_i32 : i32, i32, i32
  }
  func.func @transform_9(%arg0: i32, %arg1: i32) -> (i32, i32, i32) {
    %c0_i32 = arith.constant 0 : i32
    %c0_i32_0 = arith.constant 0 : i32
    return %arg0, %arg1, %c0_i32 : i32, i32, i32
  }
}

</mosaic_0001>

<llo_original>
// kernel: tpu_custom_call.1
$region0: #{tpu_custom_call.1}
  #allocation0 [shape = 'u32[]', space=smem, size = 0x4, offset = 0x4, fixed_abs, tag = 'smem constant byte address 0x4 - core index']
  #allocation1 [shape = 'u32[144,128]{1,0:T(1,128)}', space=vmem, size = 0x12000, scoped, tag = 'internal scratch']
  %s0 = inlined_call_operand.hbm [shape: f32[2,8,128], index: 0, kind: input, shape index: {}]
  %s1 = inlined_call_operand.hbm [shape: f32[2,8,128], index: 1, kind: input, shape index: {}]
  %s2 = inlined_call_operand.hbm [shape: f32[2,128,128], index: 2, kind: input, shape index: {}]
  %s3 = inlined_call_operand.hbm [shape: f32[2,128,128], index: 3, kind: input, shape index: {}]
  %s4 = inlined_call_operand.vmem [shape: f32[2,1,128], index: 4, kind: input, shape index: {}]
  %s5 = inlined_call_operand.hbm [shape: f32[128,128], index: 5, kind: input, shape index: {}]
  %s6 = inlined_call_operand.hbm [shape: f32[128,128], index: 6, kind: input, shape index: {}]
  %s7 = inlined_call_operand.vmem [shape: f32[1,128], index: 7, kind: input, shape index: {}]
  %s8 = inlined_call_operand.hbm [shape: f32[2,8,128], index: 8, kind: output, shape index: {0}]
  %s9 = inlined_call_operand.hbm [shape: f32[2,8,128], index: 9, kind: output, shape index: {1}]
  %10 = xla_tuple %s8, %s9
  %s11 = sld [smem:[#allocation0]]
  $region97: #{tpu_custom_call.1} parent=0
    _
  %s13 = ssub.s32 1, %s11
  %s14 = scalar_select 0, %s13, %s11
  $region1: #{tpu_custom_call.1} parent=0
    #allocation2 [shape = 'u8[8192]{0}', space=vmem, size = 0x2000, scoped, tag = 'input window, operand 0']
    #allocation3 [shape = 's32[2]{0}', space=sflag, size = 0x8, scoped, tag = 'scoped memory for tpu_custom_call.1']
    #allocation4 [shape = 's32[2]{0}', space=sflag, size = 0x8, scoped, tag = 'scoped memory for tpu_custom_call.1']
    #allocation5 [shape = 'u8[8192]{0}', space=vmem, size = 0x2000, scoped, tag = 'input window, operand 1']
    #allocation6 [shape = 's32[2]{0}', space=sflag, size = 0x8, scoped, tag = 'scoped memory for tpu_custom_call.1']
    #allocation7 [shape = 'u8[65536]{0}', space=vmem, size = 0x10000, scoped, tag = 'input window, operand 2, single buffered']
    #allocation8 [shape = 'u8[65536]{0}', space=vmem, size = 0x10000, scoped, tag = 'input window, operand 3, single buffered']
    #allocation9 [shape = 's32[1]{0}', space=sflag, size = 0x4, scoped, tag = 'scoped memory for tpu_custom_call.1']
    #allocation10 [shape = 'u8[65536]{0}', space=vmem, size = 0x10000, scoped, tag = 'input window, operand 5, single buffered']
    #allocation11 [shape = 'u8[65536]{0}', space=vmem, size = 0x10000, scoped, tag = 'input window, operand 6, single buffered']
    #allocation12 [shape = 's32[1]{0}', space=sflag, size = 0x4, scoped, tag = 'scoped memory for tpu_custom_call.1']
    #allocation13 [shape = 'u8[8192]{0}', space=vmem, size = 0x2000, scoped, tag = 'output window, operand 0']
    #allocation14 [shape = 'u8[8192]{0}', space=vmem, size = 0x2000, scoped, tag = 'output window, operand 1']
    #allocation15 [shape = 's32[2]{0}', space=sflag, size = 0x8, scoped, tag = 'scoped memory for tpu_custom_call.1']
    %15 = vsyncpa [#allocation3], 0
    %s16 = scalar_lea.sflag [#allocation3], 1
    %17 = vsyncpa %s16, 0
    %18 = vsyncpa [#allocation6], 0
    %s19 = scalar_lea.sflag [#allocation6], 1
    %20 = vsyncpa %s19, 0
    %21 = vsyncpa [#allocation9], 0
    %22 = vsyncpa [#allocation12], 0
    %23 = vsyncpa [#allocation4], 0
    %s24 = scalar_lea.sflag [#allocation4], 1
    %25 = vsyncpa %s24, 0
    %26 = vsyncpa [#allocation15], 0
    %s27 = scalar_lea.sflag [#allocation15], 1
    %28 = vsyncpa %s27, 0
    loop: start=0, step=1, limit=4
    $region2: #{tpu_custom_call.1} parent=1 // loop_pre_header
      _
    $region3: #{tpu_custom_call.1} parent=1 // loop_header
      %s30 = sphi 0, %s34
      %p31 = scmp.ge.s32.totalorder %s30, 4
      %s37 = sphi 0, %s49
      %s38 = sphi 0, %s45
      %s39 = sphi 0, %s37
      %s40 = sphi 0, %s38
      %s41 = sphi 0, %s39
      %s42 = sphi 0, %s40
      %s54 = sphi 0, %s56
      %s57 = sphi 0, %s54
      %s58 = sphi 0, %s57
      %s74 = sphi 0, %s58
      %s82 = sphi 0, %s84
      %s85 = sphi 0, %s82
      %s86 = sphi 0, %s85
      %s102 = sphi 0, %s86
      %s108 = sphi 0, %s110
      %s111 = sphi 0, %s108
      %s112 = sphi 0, %s111
      %s128 = sphi 0, %s112
      %s134 = sphi 0, %s136
      %s137 = sphi 0, %s134
      %s138 = sphi 0, %s137
      %s154 = sphi 0, %s138
      %s160 = sphi 0, %s162
      %s163 = sphi 0, %s160
      %s164 = sphi 0, %s163
      %s180 = sphi 0, %s164
      %s184 = sphi 0, %s184
      %s186 = sphi 0, %s184
      %s187 = sphi 0, %s186
      %s201 = sphi 0, %s187
      %s205 = sphi 0, %s205
      %s207 = sphi 0, %s205
      %s208 = sphi 0, %s207
      %s222 = sphi 0, %s208
      %s226 = sphi 0, %s226
      %s228 = sphi 0, %s226
      %s229 = sphi 0, %s228
      %s243 = sphi 0, %s229
      %s251 = sphi 0, %s253
      %s254 = sphi 0, %s251
      %s255 = sphi 0, %s254
      %s271 = sphi 0, %s255
      %s279 = sphi 0, %s281
      %s282 = sphi 0, %s279
      %s283 = sphi 0, %s282
      %s299 = sphi 0, %s283
    $region4: #{tpu_custom_call.1} parent=1 // loop_header_branch
      %33 = sbr.rel (%p31) target = $region8
    $region5: #{tpu_custom_call.1} parent=1 // loop_body
      %s35 = ssub.s32 %s30, 1
      %s36 = ssub.s32 %s30, 2
      %s43 = sadd.s32 1, %s38
      %p44 = scmp.ge.s32.totalorder %s43, 1
      %s45 = scalar_select %p44, 0, %s43
      %s46 = sadd.s32 1, %s37
      %s47 = scalar_select %p44, %s46, %s37
      %p48 = scmp.ge.s32.totalorder %s47, 2
      %s49 = scalar_select %p48, 0, %s47
      %s50 = ssub.s32 %s37, %s49
      %s51 = ssub.s32 %s38, %s45
      %s52 = sor.u32 %s50, %s51
      %p53 = scmp.eq.s32.totalorder %s52, 0
      %s55 = sadd.s32 %s54, 1
      %s56 = scalar_select %p53, %s54, %s55
      %p59 = pneg %p53
      %p60 = scmp.eq.s32.totalorder %s30, 1
      %p61 = por %p59, %p60
      %p62 = scmp.ne.s32.totalorder %s54, %s57
      %p63 = scmp.eq.s32.totalorder %s30, 0
      %p64 = por %p62, %p63
      %p65 = scmp.ne.s32.totalorder %s54, %s57
      %p66 = scmp.eq.s32.totalorder %s35, 1
      %p67 = por %p65, %p66
      %p68 = scmp.ne.s32.totalorder %s57, %s58
      %p69 = scmp.eq.s32.totalorder %s35, 0
      %p70 = por %p68, %p69
      %p71 = scmp.ne.s32.totalorder %s57, %s58
      %p72 = scmp.eq.s32.totalorder %s36, 1
      %p73 = por %p71, %p72
      %p75 = scmp.ne.s32.totalorder %s58, %s74
      %p76 = scmp.eq.s32.totalorder %s36, 0
      %p77 = por %p75, %p76
      %s78 = ssub.s32 %s37, %s49
      %s79 = ssub.s32 %s38, %s45
      %s80 = sor.u32 %s78, %s79
      %p81 = scmp.eq.s32.totalorder %s80, 0
      %s83 = sadd.s32 %s82, 1
      %s84 = scalar_select %p81, %s82, %s83
      %p87 = pneg %p81
      %p88 = scmp.eq.s32.totalorder %s30, 1
      %p89 = por %p87, %p88
      %p90 = scmp.ne.s32.totalorder %s82, %s85
      %p91 = scmp.eq.s32.totalorder %s30, 0
      %p92 = por %p90, %p91
      %p93 = scmp.ne.s32.totalorder %s82, %s85
      %p94 = scmp.eq.s32.totalorder %s35, 1
      %p95 = por %p93, %p94
      %p96 = scmp.ne.s32.totalorder %s85, %s86
      %p97 = scmp.eq.s32.totalorder %s35, 0
      %p98 = por %p96, %p97
      %p99 = scmp.ne.s32.totalorder %s85, %s86
      %p100 = scmp.eq.s32.totalorder %s36, 1
      %p101 = por %p99, %p100
      %p103 = scmp.ne.s32.totalorder %s86, %s102
      %p104 = scmp.eq.s32.totalorder %s36, 0
      %p105 = por %p103, %p104
      %s106 = ssub.s32 %s37, %s49
      %p107 = scmp.eq.s32.totalorder %s106, 0
      %s109 = sadd.s32 %s108, 1
      %s110 = scalar_select %p107, %s108, %s109
      %p113 = pneg %p107
      %p114 = scmp.eq.s32.totalorder %s30, 1
      %p115 = por %p113, %p114
      %p116 = scmp.ne.s32.totalorder %s108, %s111
      %p117 = scmp.eq.s32.totalorder %s30, 0
      %p118 = por %p116, %p117
      %p119 = scmp.ne.s32.totalorder %s108, %s111
      %p120 = scmp.eq.s32.totalorder %s35, 1
      %p121 = por %p119, %p120
      %p122 = scmp.ne.s32.totalorder %s111, %s112
      %p123 = scmp.eq.s32.totalorder %s35, 0
      %p124 = por %p122, %p123
      %p125 = scmp.ne.s32.totalorder %s111, %s112
      %p126 = scmp.eq.s32.totalorder %s36, 1
      %p127 = por %p125, %p126
      %p129 = scmp.ne.s32.totalorder %s112, %s128
      %p130 = scmp.eq.s32.totalorder %s36, 0
      %p131 = por %p129, %p130
      %s132 = ssub.s32 %s37, %s49
      %p133 = scmp.eq.s32.totalorder %s132, 0
      %s135 = sadd.s32 %s134, 1
      %s136 = scalar_select %p133, %s134, %s135
      %p139 = pneg %p133
      %p140 = scmp.eq.s32.totalorder %s30, 1
      %p141 = por %p139, %p140
      %p142 = scmp.ne.s32.totalorder %s134, %s137
      %p143 = scmp.eq.s32.totalorder %s30, 0
      %p144 = por %p142, %p143
      %p145 = scmp.ne.s32.totalorder %s134, %s137
      %p146 = scmp.eq.s32.totalorder %s35, 1
      %p147 = por %p145, %p146
      %p148 = scmp.ne.s32.totalorder %s137, %s138
      %p149 = scmp.eq.s32.totalorder %s35, 0
      %p150 = por %p148, %p149
      %p151 = scmp.ne.s32.totalorder %s137, %s138
      %p152 = scmp.eq.s32.totalorder %s36, 1
      %p153 = por %p151, %p152
      %p155 = scmp.ne.s32.totalorder %s138, %s154
      %p156 = scmp.eq.s32.totalorder %s36, 0
      %p157 = por %p155, %p156
      %s158 = ssub.s32 %s37, %s49
      %p159 = scmp.eq.s32.totalorder %s158, 0
      %s161 = sadd.s32 %s160, 1
      %s162 = scalar_select %p159, %s160, %s161
      %p165 = pneg %p159
      %p166 = scmp.eq.s32.totalorder %s30, 1
      %p167 = por %p165, %p166
      %p168 = scmp.ne.s32.totalorder %s160, %s163
      %p169 = scmp.eq.s32.totalorder %s30, 0
      %p170 = por %p168, %p169
      %p171 = scmp.ne.s32.totalorder %s160, %s163
      %p172 = scmp.eq.s32.totalorder %s35, 1
      %p173 = por %p171, %p172
      %p174 = scmp.ne.s32.totalorder %s163, %s164
      %p175 = scmp.eq.s32.totalorder %s35, 0
      %p176 = por %p174, %p175
      %p177 = scmp.ne.s32.totalorder %s163, %s164
      %p178 = scmp.eq.s32.totalorder %s36, 1
      %p179 = por %p177, %p178
      %p181 = scmp.ne.s32.totalorder %s164, %s180
      %p182 = scmp.eq.s32.totalorder %s36, 0
      %p183 = por %p181, %p182
      %s185 = sadd.s32 %s184, 1
      %p188 = scmp.eq.s32.totalorder %s30, 1
      %p189 = scmp.ne.s32.totalorder %s184, %s186
      %p190 = scmp.eq.s32.totalorder %s30, 0
      %p191 = por %p189, %p190
      %p192 = scmp.ne.s32.totalorder %s184, %s186
      %p193 = scmp.eq.s32.totalorder %s35, 1
      %p194 = por %p192, %p193
      %p195 = scmp.ne.s32.totalorder %s186, %s187
      %p196 = scmp.eq.s32.totalorder %s35, 0
      %p197 = por %p195, %p196
      %p198 = scmp.ne.s32.totalorder %s186, %s187
      %p199 = scmp.eq.s32.totalorder %s36, 1
      %p200 = por %p198, %p199
      %p202 = scmp.ne.s32.totalorder %s187, %s201
      %p203 = scmp.eq.s32.totalorder %s36, 0
      %p204 = por %p202, %p203
      %s206 = sadd.s32 %s205, 1
      %p209 = scmp.eq.s32.totalorder %s30, 1
      %p210 = scmp.ne.s32.totalorder %s205, %s207
      %p211 = scmp.eq.s32.totalorder %s30, 0
      %p212 = por %p210, %p211
      %p213 = scmp.ne.s32.totalorder %s205, %s207
      %p214 = scmp.eq.s32.totalorder %s35, 1
      %p215 = por %p213, %p214
      %p216 = scmp.ne.s32.totalorder %s207, %s208
      %p217 = scmp.eq.s32.totalorder %s35, 0
      %p218 = por %p216, %p217
      %p219 = scmp.ne.s32.totalorder %s207, %s208
      %p220 = scmp.eq.s32.totalorder %s36, 1
      %p221 = por %p219, %p220
      %p223 = scmp.ne.s32.totalorder %s208, %s222
      %p224 = scmp.eq.s32.totalorder %s36, 0
      %p225 = por %p223, %p224
      %s227 = sadd.s32 %s226, 1
      %p230 = scmp.eq.s32.totalorder %s30, 1
      %p231 = scmp.ne.s32.totalorder %s226, %s228
      %p232 = scmp.eq.s32.totalorder %s30, 0
      %p233 = por %p231, %p232
      %p234 = scmp.ne.s32.totalorder %s226, %s228
      %p235 = scmp.eq.s32.totalorder %s35, 1
      %p236 = por %p234, %p235
      %p237 = scmp.ne.s32.totalorder %s228, %s229
      %p238 = scmp.eq.s32.totalorder %s35, 0
      %p239 = por %p237, %p238
      %p240 = scmp.ne.s32.totalorder %s228, %s229
      %p241 = scmp.eq.s32.totalorder %s36, 1
      %p242 = por %p240, %p241
      %p244 = scmp.ne.s32.totalorder %s229, %s243
      %p245 = scmp.eq.s32.totalorder %s36, 0
      %p246 = por %p244, %p245
      %s247 = ssub.s32 %s37, %s49
      %s248 = ssub.s32 %s38, %s45
      %s249 = sor.u32 %s247, %s248
      %p250 = scmp.eq.s32.totalorder %s249, 0
      %s252 = sadd.s32 %s251, 1
      %s253 = scalar_select %p250, %s251, %s252
      %p256 = pneg %p250
      %p257 = scmp.eq.s32.totalorder %s30, 1
      %p258 = por %p256, %p257
      %p259 = scmp.ne.s32.totalorder %s251, %s254
      %p260 = scmp.eq.s32.totalorder %s30, 0
      %p261 = por %p259, %p260
      %p262 = scmp.ne.s32.totalorder %s251, %s254
      %p263 = scmp.eq.s32.totalorder %s35, 1
      %p264 = por %p262, %p263
      %p265 = scmp.ne.s32.totalorder %s254, %s255
      %p266 = scmp.eq.s32.totalorder %s35, 0
      %p267 = por %p265, %p266
      %p268 = scmp.ne.s32.totalorder %s254, %s255
      %p269 = scmp.eq.s32.totalorder %s36, 1
      %p270 = por %p268, %p269
      %p272 = scmp.ne.s32.totalorder %s255, %s271
      %p273 = scmp.eq.s32.totalorder %s36, 0
      %p274 = por %p272, %p273
      %s275 = ssub.s32 %s37, %s49
      %s276 = ssub.s32 %s38, %s45
      %s277 = sor.u32 %s275, %s276
      %p278 = scmp.eq.s32.totalorder %s277, 0
      %s280 = sadd.s32 %s279, 1
      %s281 = scalar_select %p278, %s279, %s280
      %p284 = pneg %p278
      %p285 = scmp.eq.s32.totalorder %s30, 1
      %p286 = por %p284, %p285
      %p287 = scmp.ne.s32.totalorder %s279, %s282
      %p288 = scmp.eq.s32.totalorder %s30, 0
      %p289 = por %p287, %p288
      %p290 = scmp.ne.s32.totalorder %s279, %s282
      %p291 = scmp.eq.s32.totalorder %s35, 1
      %p292 = por %p290, %p291
      %p293 = scmp.ne.s32.totalorder %s282, %s283
      %p294 = scmp.eq.s32.totalorder %s35, 0
      %p295 = por %p293, %p294
      %p296 = scmp.ne.s32.totalorder %s282, %s283
      %p297 = scmp.eq.s32.totalorder %s36, 1
      %p298 = por %p296, %p297
      %p300 = scmp.ne.s32.totalorder %s283, %s299
      %p301 = scmp.eq.s32.totalorder %s36, 0
      %p302 = por %p300, %p301
      %p303 = scmp.le.s32.totalorder 1, %s30
      %p304 = scmp.lt.s32.totalorder %s30, 3
      %p305 = pnand %p303, %p304
      %p306 = pneg %p305
      // Predicated region
      $region9: #{tpu_custom_call.1} parent=5 // pred_check
        _
      $region10: #{tpu_custom_call.1} parent=5 // pred_check_branch
        %308 = sbr.rel (%p305) target = $region12
      $region11: #{tpu_custom_call.1} parent=5 // pred_region
        %s309 = ssub.s32 %s30, 1
        // Predicated region
        $region13: #{tpu_custom_call.1} parent=11 // pred_check
          %p310 = pneg %p124
        $region14: #{tpu_custom_call.1} parent=11 // pred_check_branch
          %312 = sbr.rel (%p310) target = $region16
        $region15: #{tpu_custom_call.1} parent=11 // pred_region
          %s314 = ssub.s32 2048, 2048
          %315 = vsyncadd [#allocation6], %s314
          %s316 = smul.addr %s39, 16
          %s317 = smul.addr %s316, 128
          %s318 = scalar_lea.hbm %s2, %s317
          %s319 = sshll.u32 [#allocation7], 4
          %s320 = int_to_ptr.vmem [resolvable:$true] %s319
          %325 = dma.hbm_to_vmem [thread:$0]  %s318, 2048, %s320, [#allocation6], 128, 128, 8
        $region16: #{tpu_custom_call.1} parent=11 // pred_fallthru
          _
        // Predicated region
        $region17: #{tpu_custom_call.1} parent=11 // pred_check
          %p326 = pneg %p150
        $region18: #{tpu_custom_call.1} parent=11 // pred_check_branch
          %328 = sbr.rel (%p326) target = $region20
        $region19: #{tpu_custom_call.1} parent=11 // pred_region
          %s330 = ssub.s32 2048, 2048
          %331 = vsyncadd [#allocation9], %s330
          %s332 = smul.addr %s39, 16
          %s333 = smul.addr %s332, 128
          %s334 = scalar_lea.hbm %s3, %s333
          %s335 = sshll.u32 [#allocation8], 4
          %s336 = int_to_ptr.vmem [resolvable:$true] %s335
          %341 = dma.hbm_to_vmem [thread:$0]  %s334, 2048, %s336, [#allocation9], 128, 128, 8
        $region20: #{tpu_custom_call.1} parent=11 // pred_fallthru
          _
        // Predicated region
        $region21: #{tpu_custom_call.1} parent=11 // pred_check
          %p342 = pneg %p176
        $region22: #{tpu_custom_call.1} parent=11 // pred_check_branch
          %344 = sbr.rel (%p342) target = $region24
        $region23: #{tpu_custom_call.1} parent=11 // pred_region
          %p345 = scmp.lt.s32.totalorder %s39, 1
          %s346 = scalar_select %p345, %s39, 1
          %s347 = scalar_lea.vmem %s4, %s346
        $region24: #{tpu_custom_call.1} parent=11 // pred_fallthru
          _
        // Predicated region
        $region25: #{tpu_custom_call.1} parent=11 // pred_check
          %p348 = pneg %p197
        $region26: #{tpu_custom_call.1} parent=11 // pred_check_branch
          %350 = sbr.rel (%p348) target = $region28
        $region27: #{tpu_custom_call.1} parent=11 // pred_region
          %s352 = ssub.s32 2048, 2048
          %353 = vsyncadd [#allocation9], %s352
          %s354 = sshll.u32 [#allocation10], 4
          %s355 = int_to_ptr.vmem [resolvable:$true] %s354
          %360 = dma.hbm_to_vmem [thread:$0]  %s5, 2048, %s355, [#allocation9], 128, 128, 8
        $region28: #{tpu_custom_call.1} parent=11 // pred_fallthru
          _
        // Predicated region
        $region29: #{tpu_custom_call.1} parent=11 // pred_check
          %p361 = pneg %p218
        $region30: #{tpu_custom_call.1} parent=11 // pred_check_branch
          %363 = sbr.rel (%p361) target = $region32
        $region31: #{tpu_custom_call.1} parent=11 // pred_region
          %s365 = ssub.s32 2048, 2048
          %366 = vsyncadd [#allocation12], %s365
          %s367 = sshll.u32 [#allocation11], 4
          %s368 = int_to_ptr.vmem [resolvable:$true] %s367
          %373 = dma.hbm_to_vmem [thread:$0]  %s6, 2048, %s368, [#allocation12], 128, 128, 8
        $region32: #{tpu_custom_call.1} parent=11 // pred_fallthru
          _
        // Predicated region
        $region33: #{tpu_custom_call.1} parent=11 // pred_check
          %p374 = pneg %p239
        $region34: #{tpu_custom_call.1} parent=11 // pred_check_branch
          %376 = sbr.rel (%p374) target = $region36
        $region35: #{tpu_custom_call.1} parent=11 // pred_region
          _
        $region36: #{tpu_custom_call.1} parent=11 // pred_fallthru
          _
      $region12: #{tpu_custom_call.1} parent=5 // pred_fallthru
        _
      %p377 = scmp.lt.s32.totalorder %s30, 2
      // Predicated region
      $region37: #{tpu_custom_call.1} parent=5 // pred_check
        %p378 = pneg %p377
      $region38: #{tpu_custom_call.1} parent=5 // pred_check_branch
        %380 = sbr.rel (%p378) target = $region40
      $region39: #{tpu_custom_call.1} parent=5 // pred_region
        // Predicated region
        $region41: #{tpu_custom_call.1} parent=39 // pred_check
          %p381 = pneg %p64
        $region42: #{tpu_custom_call.1} parent=39 // pred_check_branch
          %383 = sbr.rel (%p381) target = $region44
        $region43: #{tpu_custom_call.1} parent=39 // pred_region
          %s384 = sand.u32 %s54, 1
          %s385 = scalar_lea.sflag [#allocation3], %s384
          %s386 = sand.u32 %s54, 1
          %s387 = smul.addr %s386, 8
          %s388 = scalar_lea.vmem [#allocation2], %s387
          %s390 = ssub.s32 128, 128
          %391 = vsyncadd %s385, %s390
          %s392 = sadd.s32 %s38, %s37
          %s393 = smul.addr %s392, 128
          %s394 = scalar_lea.hbm %s0, %s393
          %s396 = sshll.u32 %s388, 4
          %s397 = int_to_ptr.vmem [resolvable:$true] %s396
          %399 = dma.hbm_to_vmem [thread:$0]  %s394, 128, %s397, %s385
        $region44: #{tpu_custom_call.1} parent=39 // pred_fallthru
          _
        // Predicated region
        $region45: #{tpu_custom_call.1} parent=39 // pred_check
          %p400 = pneg %p92
        $region46: #{tpu_custom_call.1} parent=39 // pred_check_branch
          %402 = sbr.rel (%p400) target = $region48
        $region47: #{tpu_custom_call.1} parent=39 // pred_region
          %s403 = sand.u32 %s30, 1
          %s404 = scalar_lea.sflag [#allocation6], %s403
          %s405 = sand.u32 %s82, 1
          %s406 = smul.addr %s405, 8
          %s407 = scalar_lea.vmem [#allocation5], %s406
          %s409 = ssub.s32 128, 128
          %410 = vsyncadd %s404, %s409
          %s411 = sadd.s32 %s38, %s37
          %s412 = smul.addr %s411, 128
          %s413 = scalar_lea.hbm %s1, %s412
          %s415 = sshll.u32 %s407, 4
          %s416 = int_to_ptr.vmem [resolvable:$true] %s415
          %418 = dma.hbm_to_vmem [thread:$0]  %s413, 128, %s416, %s404
        $region48: #{tpu_custom_call.1} parent=39 // pred_fallthru
          _
      $region40: #{tpu_custom_call.1} parent=5 // pred_fallthru
        _
      %p419 = scmp.le.s32.totalorder 1, %s30
      %p420 = scmp.lt.s32.totalorder %s30, 3
      %p421 = pnand %p419, %p420
      %p422 = pneg %p421
      // Predicated region
      $region49: #{tpu_custom_call.1} parent=5 // pred_check
        _
      $region50: #{tpu_custom_call.1} parent=5 // pred_check_branch
        %424 = sbr.rel (%p421) target = $region52
      $region51: #{tpu_custom_call.1} parent=5 // pred_region
        %s425 = ssub.s32 %s30, 1
        %s426 = sand.u32 %s57, 1
        %s427 = scalar_lea.sflag [#allocation3], %s426
        %s428 = sand.u32 %s57, 1
        %s429 = smul.addr %s428, 8
        %s430 = scalar_lea.vmem [#allocation2], %s429
        // Predicated region
        $region53: #{tpu_custom_call.1} parent=51 // pred_check
          %p431 = pneg %p70
        $region54: #{tpu_custom_call.1} parent=51 // pred_check_branch
          %433 = sbr.rel (%p431) target = $region56
        $region55: #{tpu_custom_call.1} parent=51 // pred_region
          %434 = dma.done %s427, 128
        $region56: #{tpu_custom_call.1} parent=51 // pred_fallthru
          _
        %s435 = sand.u32 %s35, 1
        %s436 = scalar_lea.sflag [#allocation6], %s435
        %s437 = sand.u32 %s85, 1
        %s438 = smul.addr %s437, 8
        %s439 = scalar_lea.vmem [#allocation5], %s438
        // Predicated region
        $region57: #{tpu_custom_call.1} parent=51 // pred_check
          %p440 = pneg %p98
        $region58: #{tpu_custom_call.1} parent=51 // pred_check_branch
          %442 = sbr.rel (%p440) target = $region60
        $region59: #{tpu_custom_call.1} parent=51 // pred_region
          %443 = dma.done %s436, 128
        $region60: #{tpu_custom_call.1} parent=51 // pred_fallthru
          _
        // Predicated region
        $region61: #{tpu_custom_call.1} parent=51 // pred_check
          %p444 = pneg %p124
        $region62: #{tpu_custom_call.1} parent=51 // pred_check_branch
          %446 = sbr.rel (%p444) target = $region64
        $region63: #{tpu_custom_call.1} parent=51 // pred_region
          %447 = dma.done [#allocation6], 2048
        $region64: #{tpu_custom_call.1} parent=51 // pred_fallthru
          _
        // Predicated region
        $region65: #{tpu_custom_call.1} parent=51 // pred_check
          %p448 = pneg %p150
        $region66: #{tpu_custom_call.1} parent=51 // pred_check_branch
          %450 = sbr.rel (%p448) target = $region68
        $region67: #{tpu_custom_call.1} parent=51 // pred_region
          %451 = dma.done [#allocation9], 2048
        $region68: #{tpu_custom_call.1} parent=51 // pred_fallthru
          _
        // Predicated region
        $region69: #{tpu_custom_call.1} parent=51 // pred_check
          %p452 = pneg %p197
        $region70: #{tpu_custom_call.1} parent=51 // pred_check_branch
          %454 = sbr.rel (%p452) target = $region72
        $region71: #{tpu_custom_call.1} parent=51 // pred_region
          %455 = dma.done [#allocation9], 2048
        $region72: #{tpu_custom_call.1} parent=51 // pred_fallthru
          _
        // Predicated region
        $region73: #{tpu_custom_call.1} parent=51 // pred_check
          %p456 = pneg %p218
        $region74: #{tpu_custom_call.1} parent=51 // pred_check_branch
          %458 = sbr.rel (%p456) target = $region76
        $region75: #{tpu_custom_call.1} parent=51 // pred_region
          %459 = dma.done [#allocation12], 2048
        $region76: #{tpu_custom_call.1} parent=51 // pred_fallthru
          _
        %s460 = sand.u32 %s57, 1
        %s461 = scalar_lea.sflag [#allocation3], %s460
        %s462 = sand.u32 %s57, 1
        %s463 = smul.addr %s462, 8
        %s464 = scalar_lea.vmem [#allocation2], %s463
        %p465 = pneg %p70
        %p466 = pneg %p67
        %s467 = sand.u32 %s35, 1
        %s468 = scalar_lea.sflag [#allocation6], %s467
        %s469 = sand.u32 %s85, 1
        %s470 = smul.addr %s469, 8
        %s471 = scalar_lea.vmem [#allocation5], %s470
        %p472 = pneg %p98
        %p473 = pneg %p95
        %p474 = pneg %p124
        %p475 = pneg %p121
        %p476 = pneg %p150
        %p477 = pneg %p147
        %p478 = scmp.lt.s32.totalorder %s39, 1
        %s479 = scalar_select %p478, %s39, 1
        %s480 = scalar_lea.vmem %s4, %s479
        %p481 = pneg %p176
        %p482 = pneg %p173
        %p483 = pneg %p197
        %p484 = pneg %p194
        %p485 = pneg %p218
        %p486 = pneg %p215
        %p487 = pneg %p239
        %p488 = pneg %p236
        %p489 = pneg %p267
        %p490 = pneg %p264
        %s491 = sand.u32 %s254, 1
        %s492 = scalar_lea.sflag [#allocation4], %s491
        %s493 = sand.u32 %s254, 1
        %s494 = smul.addr %s493, 8
        %s495 = scalar_lea.vmem [#allocation13], %s494
        %p496 = pneg %p295
        %p497 = pneg %p292
        %s498 = sand.u32 %s282, 1
        %s499 = scalar_lea.sflag [#allocation15], %s498
        %s500 = sand.u32 %s282, 1
        %s501 = smul.addr %s500, 8
        %s502 = scalar_lea.vmem [#allocation14], %s501
        %p503 = scmp.lt.s32.totalorder %s39, 1
        %s504 = scalar_select %p503, %s39, 1
        %s505 = scalar_lea.vmem %s4, %s504
        %v506 = vld [vmem:[%s430] sm:$0xff]
        %v507 = vld [vmem:[#allocation10] sm:$0xff]
        %v508 = vld [vmem:[#allocation10 + $0x8] sm:$0xff]
        %v509 = vld [vmem:[#allocation10 + $0x10] sm:$0xff]
        %v510 = vld [vmem:[#allocation10 + $0x18] sm:$0xff]
        %v511 = vld [vmem:[#allocation10 + $0x20] sm:$0xff]
        %v512 = vld [vmem:[#allocation10 + $0x28] sm:$0xff]
        %v513 = vld [vmem:[#allocation10 + $0x30] sm:$0xff]
        %v514 = vld [vmem:[#allocation10 + $0x38] sm:$0xff]
        %v515 = vld [vmem:[#allocation10 + $0x40] sm:$0xff]
        %v516 = vld [vmem:[#allocation10 + $0x48] sm:$0xff]
        %v517 = vld [vmem:[#allocation10 + $0x50] sm:$0xff]
        %v518 = vld [vmem:[#allocation10 + $0x58] sm:$0xff]
        %v519 = vld [vmem:[#allocation10 + $0x60] sm:$0xff]
        %v520 = vld [vmem:[#allocation10 + $0x68] sm:$0xff]
        %v521 = vld [vmem:[#allocation10 + $0x70] sm:$0xff]
        %v522 = vld [vmem:[#allocation10 + $0x78] sm:$0xff]
        %v523 = vld [vmem:[%s439] sm:$0xff]
        %524 = vmatprep.subr.mxu0 0.0
        %525 = vmatpush1.msra.mxu0 %v522
        %526 = vmatprep.subr.mxu0 0.0
        %527 = vmatpush1.msra.mxu0 %v521
        %528 = vmatprep.subr.mxu0 0.0
        %529 = vmatpush1.msra.mxu0 %v520
        %530 = vmatprep.subr.mxu0 0.0
        %531 = vmatpush1.msra.mxu0 %v519
        %532 = vmatprep.subr.mxu0 0.0
        %533 = vmatpush1.msra.mxu0 %v518
        %534 = vmatprep.subr.mxu0 0.0
        %535 = vmatpush1.msra.mxu0 %v517
        %536 = vmatprep.subr.mxu0 0.0
        %537 = vmatpush1.msra.mxu0 %v516
        %538 = vmatprep.subr.mxu0 0.0
        %539 = vmatpush1.msra.mxu0 %v515
        %540 = vmatprep.subr.mxu0 0.0
        %541 = vmatpush1.msra.mxu0 %v514
        %542 = vmatprep.subr.mxu0 0.0
        %543 = vmatpush1.msra.mxu0 %v513
        %544 = vmatprep.subr.mxu0 0.0
        %545 = vmatpush1.msra.mxu0 %v512
        %546 = vmatprep.subr.mxu0 0.0
        %547 = vmatpush1.msra.mxu0 %v511
        %548 = vmatprep.subr.mxu0 0.0
        %549 = vmatpush1.msra.mxu0 %v510
        %550 = vmatprep.subr.mxu0 0.0
        %551 = vmatpush1.msra.mxu0 %v509
        %552 = vmatprep.subr.mxu0 0.0
        %553 = vmatpush1.msra.mxu0 %v508
        %554 = vmatprep.subr.mxu0 0.0
        %555 = vmatpush1.msra.mxu0 %v507
        %556 = vmatprep.subr.mxu0 0.0
        %557 = vmatpush2.msra.mxu0 0.0
        %558 = vmatprep.subr.mxu0 0.0
        %559 = vmatpush2.msra.mxu0 0.0
        %560 = vmatprep.subr.mxu0 0.0
        %561 = vmatpush2.msra.mxu0 0.0
        %562 = vmatprep.subr.mxu0 0.0
        %563 = vmatpush2.msra.mxu0 0.0
        %564 = vmatprep.subr.mxu0 0.0
        %565 = vmatpush2.msra.mxu0 0.0
        %566 = vmatprep.subr.mxu0 0.0
        %567 = vmatpush2.msra.mxu0 0.0
        %568 = vmatprep.subr.mxu0 0.0
        %569 = vmatpush2.msra.mxu0 0.0
        %570 = vmatprep.subr.mxu0 0.0
        %571 = vmatpush2.msra.mxu0 0.0
        %572 = vmatprep.subr.mxu0 0.0
        %573 = vmatpush2.msra.mxu0 0.0
        %574 = vmatprep.subr.mxu0 0.0
        %575 = vmatpush2.msra.mxu0 0.0
        %576 = vmatprep.subr.mxu0 0.0
        %577 = vmatpush2.msra.mxu0 0.0
        %578 = vmatprep.subr.mxu0 0.0
        %579 = vmatpush2.msra.mxu0 0.0
        %580 = vmatprep.subr.mxu0 0.0
        %581 = vmatpush2.msra.mxu0 0.0
        %582 = vmatprep.subr.mxu0 0.0
        %583 = vmatpush2.msra.mxu0 0.0
        %584 = vmatprep.subr.mxu0 0.0
        %585 = vmatpush2.msra.mxu0 0.0
        %586 = vmatprep.subr.mxu0 0.0
        %587 = vmatpush2.msra.mxu0 0.0
        %588 = vmatprep.mubr.f32.mxu0 0.0
        %589 = vmatmul.mubr.f32.gmra.mxu0 %v506
        %v590 = vpop.f32.mrf.mxu0
        %v591 = vadd.f32 %v523, %v590
        %v592 = vpop.f32.mrf.mxu0
        %593 = vdwg.mxu0
        %v594 = vld [vmem:[#allocation7] sm:$0xff]
        %v595 = vld [vmem:[#allocation7 + $0x8] sm:$0xff]
        %v596 = vld [vmem:[#allocation7 + $0x10] sm:$0xff]
        %v597 = vld [vmem:[#allocation7 + $0x18] sm:$0xff]
        %v598 = vld [vmem:[#allocation7 + $0x20] sm:$0xff]
        %v599 = vld [vmem:[#allocation7 + $0x28] sm:$0xff]
        %v600 = vld [vmem:[#allocation7 + $0x30] sm:$0xff]
        %v601 = vld [vmem:[#allocation7 + $0x38] sm:$0xff]
        %v602 = vld [vmem:[#allocation7 + $0x40] sm:$0xff]
        %v603 = vld [vmem:[#allocation7 + $0x48] sm:$0xff]
        %v604 = vld [vmem:[#allocation7 + $0x50] sm:$0xff]
        %v605 = vld [vmem:[#allocation7 + $0x58] sm:$0xff]
        %v606 = vld [vmem:[#allocation7 + $0x60] sm:$0xff]
        %v607 = vld [vmem:[#allocation7 + $0x68] sm:$0xff]
        %v608 = vld [vmem:[#allocation7 + $0x70] sm:$0xff]
        %v609 = vld [vmem:[#allocation7 + $0x78] sm:$0xff]
        %v610 = vld [vmem:[%s505] sm:$0x1]
        %v612 = vlaneseq
        %v613 = vshrl.u32 %v612, 7
        %v614 = vsub.s32 0, %v613
        %v615 = vrot.slane %v610, %v614
        %617 = vmatprep.subr.mxu0 0.0
        %618 = vmatpush1.msra.mxu0 %v609
        %619 = vmatprep.subr.mxu0 0.0
        %620 = vmatpush1.msra.mxu0 %v608
        %621 = vmatprep.subr.mxu0 0.0
        %622 = vmatpush1.msra.mxu0 %v607
        %623 = vmatprep.subr.mxu0 0.0
        %624 = vmatpush1.msra.mxu0 %v606
        %625 = vmatprep.subr.mxu0 0.0
        %626 = vmatpush1.msra.mxu0 %v605
        %627 = vmatprep.subr.mxu0 0.0
        %628 = vmatpush1.msra.mxu0 %v604
        %629 = vmatprep.subr.mxu0 0.0
        %630 = vmatpush1.msra.mxu0 %v603
        %631 = vmatprep.subr.mxu0 0.0
        %632 = vmatpush1.msra.mxu0 %v602
        %633 = vmatprep.subr.mxu0 0.0
        %634 = vmatpush1.msra.mxu0 %v601
        %635 = vmatprep.subr.mxu0 0.0
        %636 = vmatpush1.msra.mxu0 %v600
        %637 = vmatprep.subr.mxu0 0.0
        %638 = vmatpush1.msra.mxu0 %v599
        %639 = vmatprep.subr.mxu0 0.0
        %640 = vmatpush1.msra.mxu0 %v598
        %641 = vmatprep.subr.mxu0 0.0
        %642 = vmatpush1.msra.mxu0 %v597
        %643 = vmatprep.subr.mxu0 0.0
        %644 = vmatpush1.msra.mxu0 %v596
        %645 = vmatprep.subr.mxu0 0.0
        %646 = vmatpush1.msra.mxu0 %v595
        %647 = vmatprep.subr.mxu0 0.0
        %648 = vmatpush1.msra.mxu0 %v594
        %649 = vmatprep.subr.mxu0 0.0
        %650 = vmatpush2.msra.mxu0 0.0
        %651 = vmatprep.subr.mxu0 0.0
        %652 = vmatpush2.msra.mxu0 0.0
        %653 = vmatprep.subr.mxu0 0.0
        %654 = vmatpush2.msra.mxu0 0.0
        %655 = vmatprep.subr.mxu0 0.0
        %656 = vmatpush2.msra.mxu0 0.0
        %657 = vmatprep.subr.mxu0 0.0
        %658 = vmatpush2.msra.mxu0 0.0
        %659 = vmatprep.subr.mxu0 0.0
        %660 = vmatpush2.msra.mxu0 0.0
        %661 = vmatprep.subr.mxu0 0.0
        %662 = vmatpush2.msra.mxu0 0.0
        %663 = vmatprep.subr.mxu0 0.0
        %664 = vmatpush2.msra.mxu0 0.0
        %665 = vmatprep.subr.mxu0 0.0
        %666 = vmatpush2.msra.mxu0 0.0
        %667 = vmatprep.subr.mxu0 0.0
        %668 = vmatpush2.msra.mxu0 0.0
        %669 = vmatprep.subr.mxu0 0.0
        %670 = vmatpush2.msra.mxu0 0.0
        %671 = vmatprep.subr.mxu0 0.0
        %672 = vmatpush2.msra.mxu0 0.0
        %673 = vmatprep.subr.mxu0 0.0
        %674 = vmatpush2.msra.mxu0 0.0
        %675 = vmatprep.subr.mxu0 0.0
        %676 = vmatpush2.msra.mxu0 0.0
        %677 = vmatprep.subr.mxu0 0.0
        %678 = vmatpush2.msra.mxu0 0.0
        %679 = vmatprep.subr.mxu0 0.0
        %680 = vmatpush2.msra.mxu0 0.0
        %681 = vmatprep.mubr.f32.mxu0 0.0
        %682 = vmatmul.mubr.f32.gmra.mxu0 %v591
        %v683 = vpop.f32.mrf.mxu0
        %v684 = vadd.f32 %v615, %v683
        %v685 = vpop.f32.mrf.mxu0
        %686 = vdwg.mxu0
        %687 = vmax.xlane.f32.xlu0 %v684
        %v688 = vpop.xlane.xlu0 %687
        %v689 = vsub.f32 %v684, %v688
        %v690 = vmul.f32 %v689, 1.442695
        %v691 = vpow.pop %v690
        %692 = vadd.xlane.f32.xlu0 %v691
        %v693 = vpop.xlane.xlu0 %692
        %v694 = vrcp.pop %v693
        %v695 = vmul.f32 %v693, %v694
        %v696 = vsub.f32 2.0, %v695
        %v697 = vmul.f32 %v694, %v696
        %v698 = vmul.f32 %v691, %v697
        %699 = vst [vmem:[%s502] sm:$0xff] %v698
        %v700 = vld [vmem:[#allocation8] sm:$0xff]
        %v701 = vld [vmem:[#allocation8 + $0x8] sm:$0xff]
        %v702 = vld [vmem:[#allocation8 + $0x10] sm:$0xff]
        %v703 = vld [vmem:[#allocation8 + $0x18] sm:$0xff]
        %v704 = vld [vmem:[#allocation8 + $0x20] sm:$0xff]
        %v705 = vld [vmem:[#allocation8 + $0x28] sm:$0xff]
        %v706 = vld [vmem:[#allocation8 + $0x30] sm:$0xff]
        %v707 = vld [vmem:[#allocation8 + $0x38] sm:$0xff]
        %v708 = vld [vmem:[#allocation8 + $0x40] sm:$0xff]
        %v709 = vld [vmem:[#allocation8 + $0x48] sm:$0xff]
        %v710 = vld [vmem:[#allocation8 + $0x50] sm:$0xff]
        %v711 = vld [vmem:[#allocation8 + $0x58] sm:$0xff]
        %v712 = vld [vmem:[#allocation8 + $0x60] sm:$0xff]
        %v713 = vld [vmem:[#allocation8 + $0x68] sm:$0xff]
        %v714 = vld [vmem:[#allocation8 + $0x70] sm:$0xff]
        %v715 = vld [vmem:[#allocation8 + $0x78] sm:$0xff]
        %716 = vmatprep.subr.mxu0 0.0
        %717 = vmatpush1.msra.mxu0 %v715
        %718 = vmatprep.subr.mxu0 0.0
        %719 = vmatpush1.msra.mxu0 %v714
        %720 = vmatprep.subr.mxu0 0.0
        %721 = vmatpush1.msra.mxu0 %v713
        %722 = vmatprep.subr.mxu0 0.0
        %723 = vmatpush1.msra.mxu0 %v712
        %724 = vmatprep.subr.mxu0 0.0
        %725 = vmatpush1.msra.mxu0 %v711
        %726 = vmatprep.subr.mxu0 0.0
        %727 = vmatpush1.msra.mxu0 %v710
        %728 = vmatprep.subr.mxu0 0.0
        %729 = vmatpush1.msra.mxu0 %v709
        %730 = vmatprep.subr.mxu0 0.0
        %731 = vmatpush1.msra.mxu0 %v708
        %732 = vmatprep.subr.mxu0 0.0
        %733 = vmatpush1.msra.mxu0 %v707
        %734 = vmatprep.subr.mxu0 0.0
        %735 = vmatpush1.msra.mxu0 %v706
        %736 = vmatprep.subr.mxu0 0.0
        %737 = vmatpush1.msra.mxu0 %v705
        %738 = vmatprep.subr.mxu0 0.0
        %739 = vmatpush1.msra.mxu0 %v704
        %740 = vmatprep.subr.mxu0 0.0
        %741 = vmatpush1.msra.mxu0 %v703
        %742 = vmatprep.subr.mxu0 0.0
        %743 = vmatpush1.msra.mxu0 %v702
        %744 = vmatprep.subr.mxu0 0.0
        %745 = vmatpush1.msra.mxu0 %v701
        %746 = vmatprep.subr.mxu0 0.0
        %747 = vmatpush1.msra.mxu0 %v700
        %748 = vmatprep.subr.mxu0 0.0
        %749 = vmatpush2.msra.mxu0 0.0
        %750 = vmatprep.subr.mxu0 0.0
        %751 = vmatpush2.msra.mxu0 0.0
        %752 = vmatprep.subr.mxu0 0.0
        %753 = vmatpush2.msra.mxu0 0.0
        %754 = vmatprep.subr.mxu0 0.0
        %755 = vmatpush2.msra.mxu0 0.0
        %756 = vmatprep.subr.mxu0 0.0
        %757 = vmatpush2.msra.mxu0 0.0
        %758 = vmatprep.subr.mxu0 0.0
        %759 = vmatpush2.msra.mxu0 0.0
        %760 = vmatprep.subr.mxu0 0.0
        %761 = vmatpush2.msra.mxu0 0.0
        %762 = vmatprep.subr.mxu0 0.0
        %763 = vmatpush2.msra.mxu0 0.0
        %764 = vmatprep.subr.mxu0 0.0
        %765 = vmatpush2.msra.mxu0 0.0
        %766 = vmatprep.subr.mxu0 0.0
        %767 = vmatpush2.msra.mxu0 0.0
        %768 = vmatprep.subr.mxu0 0.0
        %769 = vmatpush2.msra.mxu0 0.0
        %770 = vmatprep.subr.mxu0 0.0
        %771 = vmatpush2.msra.mxu0 0.0
        %772 = vmatprep.subr.mxu0 0.0
        %773 = vmatpush2.msra.mxu0 0.0
        %774 = vmatprep.subr.mxu0 0.0
        %775 = vmatpush2.msra.mxu0 0.0
        %776 = vmatprep.subr.mxu0 0.0
        %777 = vmatpush2.msra.mxu0 0.0
        %778 = vmatprep.subr.mxu0 0.0
        %779 = vmatpush2.msra.mxu0 0.0
        %780 = vmatprep.mubr.f32.mxu0 0.0
        %781 = vmatmul.mubr.f32.gmra.mxu0 %v698
        %v782 = vpop.f32.mrf.mxu0
        %v783 = vadd.f32 0.0, %v782
        %v784 = vpop.f32.mrf.mxu0
        %785 = vdwg.mxu0
        %v786 = vld [vmem:[#allocation11] sm:$0xff]
        %v787 = vld [vmem:[#allocation11 + $0x8] sm:$0xff]
        %v788 = vld [vmem:[#allocation11 + $0x10] sm:$0xff]
        %v789 = vld [vmem:[#allocation11 + $0x18] sm:$0xff]
        %v790 = vld [vmem:[#allocation11 + $0x20] sm:$0xff]
        %v791 = vld [vmem:[#allocation11 + $0x28] sm:$0xff]
        %v792 = vld [vmem:[#allocation11 + $0x30] sm:$0xff]
        %v793 = vld [vmem:[#allocation11 + $0x38] sm:$0xff]
        %v794 = vld [vmem:[#allocation11 + $0x40] sm:$0xff]
        %v795 = vld [vmem:[#allocation11 + $0x48] sm:$0xff]
        %v796 = vld [vmem:[#allocation11 + $0x50] sm:$0xff]
        %v797 = vld [vmem:[#allocation11 + $0x58] sm:$0xff]
        %v798 = vld [vmem:[#allocation11 + $0x60] sm:$0xff]
        %v799 = vld [vmem:[#allocation11 + $0x68] sm:$0xff]
        %v800 = vld [vmem:[#allocation11 + $0x70] sm:$0xff]
        %v801 = vld [vmem:[#allocation11 + $0x78] sm:$0xff]
        %v802 = vld [vmem:[%s7] sm:$0x1]
        %v804 = vlaneseq
        %v805 = vshrl.u32 %v804, 7
        %v806 = vsub.s32 0, %v805
        %v807 = vrot.slane %v802, %v806
        %809 = vmatprep.subr.mxu0 0.0
        %810 = vmatpush1.msra.mxu0 %v801
        %811 = vmatprep.subr.mxu0 0.0
        %812 = vmatpush1.msra.mxu0 %v800
        %813 = vmatprep.subr.mxu0 0.0
        %814 = vmatpush1.msra.mxu0 %v799
        %815 = vmatprep.subr.mxu0 0.0
        %816 = vmatpush1.msra.mxu0 %v798
        %817 = vmatprep.subr.mxu0 0.0
        %818 = vmatpush1.msra.mxu0 %v797
        %819 = vmatprep.subr.mxu0 0.0
        %820 = vmatpush1.msra.mxu0 %v796
        %821 = vmatprep.subr.mxu0 0.0
        %822 = vmatpush1.msra.mxu0 %v795
        %823 = vmatprep.subr.mxu0 0.0
        %824 = vmatpush1.msra.mxu0 %v794
        %825 = vmatprep.subr.mxu0 0.0
        %826 = vmatpush1.msra.mxu0 %v793
        %827 = vmatprep.subr.mxu0 0.0
        %828 = vmatpush1.msra.mxu0 %v792
        %829 = vmatprep.subr.mxu0 0.0
        %830 = vmatpush1.msra.mxu0 %v791
        %831 = vmatprep.subr.mxu0 0.0
        %832 = vmatpush1.msra.mxu0 %v790
        %833 = vmatprep.subr.mxu0 0.0
        %834 = vmatpush1.msra.mxu0 %v789
        %835 = vmatprep.subr.mxu0 0.0
        %836 = vmatpush1.msra.mxu0 %v788
        %837 = vmatprep.subr.mxu0 0.0
        %838 = vmatpush1.msra.mxu0 %v787
        %839 = vmatprep.subr.mxu0 0.0
        %840 = vmatpush1.msra.mxu0 %v786
        %841 = vmatprep.subr.mxu0 0.0
        %842 = vmatpush2.msra.mxu0 0.0
        %843 = vmatprep.subr.mxu0 0.0
        %844 = vmatpush2.msra.mxu0 0.0
        %845 = vmatprep.subr.mxu0 0.0
        %846 = vmatpush2.msra.mxu0 0.0
        %847 = vmatprep.subr.mxu0 0.0
        %848 = vmatpush2.msra.mxu0 0.0
        %849 = vmatprep.subr.mxu0 0.0
        %850 = vmatpush2.msra.mxu0 0.0
        %851 = vmatprep.subr.mxu0 0.0
        %852 = vmatpush2.msra.mxu0 0.0
        %853 = vmatprep.subr.mxu0 0.0
        %854 = vmatpush2.msra.mxu0 0.0
        %855 = vmatprep.subr.mxu0 0.0
        %856 = vmatpush2.msra.mxu0 0.0
        %857 = vmatprep.subr.mxu0 0.0
        %858 = vmatpush2.msra.mxu0 0.0
        %859 = vmatprep.subr.mxu0 0.0
        %860 = vmatpush2.msra.mxu0 0.0
        %861 = vmatprep.subr.mxu0 0.0
        %862 = vmatpush2.msra.mxu0 0.0
        %863 = vmatprep.subr.mxu0 0.0
        %864 = vmatpush2.msra.mxu0 0.0
        %865 = vmatprep.subr.mxu0 0.0
        %866 = vmatpush2.msra.mxu0 0.0
        %867 = vmatprep.subr.mxu0 0.0
        %868 = vmatpush2.msra.mxu0 0.0
        %869 = vmatprep.subr.mxu0 0.0
        %870 = vmatpush2.msra.mxu0 0.0
        %871 = vmatprep.subr.mxu0 0.0
        %872 = vmatpush2.msra.mxu0 0.0
        %873 = vmatprep.mubr.f32.mxu0 0.0
        %874 = vmatmul.mubr.f32.gmra.mxu0 %v783
        %v875 = vpop.f32.mrf.mxu0
        %v876 = vadd.f32 %v807, %v875
        %v877 = vpop.f32.mrf.mxu0
        %878 = vdwg.mxu0
        %v879 = vmul.f32 %v506, 0.70710677
        %v880 = vadd.f32 %v876, %v879
        %881 = vst [vmem:[%s495] sm:$0xff] %v880
        %s882 = sand.u32 %s254, 1
        %s883 = scalar_lea.sflag [#allocation4], %s882
        %s884 = sand.u32 %s254, 1
        %s885 = smul.addr %s884, 8
        %s886 = scalar_lea.vmem [#allocation13], %s885
        %s887 = sand.u32 %s282, 1
        %s888 = scalar_lea.sflag [#allocation15], %s887
        %s889 = sand.u32 %s282, 1
        %s890 = smul.addr %s889, 8
        %s891 = scalar_lea.vmem [#allocation14], %s890
        // Predicated region
        $region77: #{tpu_custom_call.1} parent=51 // pred_check
          %p892 = pneg %p264
        $region78: #{tpu_custom_call.1} parent=51 // pred_check_branch
          %894 = sbr.rel (%p892) target = $region80
        $region79: #{tpu_custom_call.1} parent=51 // pred_region
          %s896 = ssub.s32 128, 128
          %897 = vsyncadd %s883, %s896
          %s898 = sadd.s32 %s40, %s39
          %s899 = smul.addr %s898, 128
          %s900 = scalar_lea.hbm %s8, %s899
          %s902 = sshll.u32 %s886, 4
          %s903 = int_to_ptr.vmem [resolvable:$true] %s902
          %905 = dma.vmem_to_hbm [thread:$0]  %s903, 128, %s900, %s883
        $region80: #{tpu_custom_call.1} parent=51 // pred_fallthru
          _
        // Predicated region
        $region81: #{tpu_custom_call.1} parent=51 // pred_check
          %p906 = pneg %p292
        $region82: #{tpu_custom_call.1} parent=51 // pred_check_branch
          %908 = sbr.rel (%p906) target = $region84
        $region83: #{tpu_custom_call.1} parent=51 // pred_region
          %s910 = ssub.s32 128, 128
          %911 = vsyncadd %s888, %s910
          %s912 = sadd.s32 %s40, %s39
          %s913 = smul.addr %s912, 128
          %s914 = scalar_lea.hbm %s9, %s913
          %s916 = sshll.u32 %s891, 4
          %s917 = int_to_ptr.vmem [resolvable:$true] %s916
          %919 = dma.vmem_to_hbm [thread:$0]  %s917, 128, %s914, %s888
        $region84: #{tpu_custom_call.1} parent=51 // pred_fallthru
          _
      $region52: #{tpu_custom_call.1} parent=5 // pred_fallthru
        _
      %p920 = scmp.le.s32.totalorder 2, %s30
      // Predicated region
      $region85: #{tpu_custom_call.1} parent=5 // pred_check
        %p921 = pneg %p920
      $region86: #{tpu_custom_call.1} parent=5 // pred_check_branch
        %923 = sbr.rel (%p921) target = $region88
      $region87: #{tpu_custom_call.1} parent=5 // pred_region
        %s924 = ssub.s32 %s30, 2
        // Predicated region
        $region89: #{tpu_custom_call.1} parent=87 // pred_check
          %p925 = pneg %p270
        $region90: #{tpu_custom_call.1} parent=87 // pred_check_branch
          %927 = sbr.rel (%p925) target = $region92
        $region91: #{tpu_custom_call.1} parent=87 // pred_region
          %s928 = sand.u32 %s255, 1
          %s929 = scalar_lea.sflag [#allocation4], %s928
          %s930 = sand.u32 %s255, 1
          %s931 = smul.addr %s930, 8
          %s932 = scalar_lea.vmem [#allocation13], %s931
          %933 = dma.done %s929, 128
        $region92: #{tpu_custom_call.1} parent=87 // pred_fallthru
          _
        // Predicated region
        $region93: #{tpu_custom_call.1} parent=87 // pred_check
          %p934 = pneg %p298
        $region94: #{tpu_custom_call.1} parent=87 // pred_check_branch
          %936 = sbr.rel (%p934) target = $region96
        $region95: #{tpu_custom_call.1} parent=87 // pred_region
          %s937 = sand.u32 %s283, 1
          %s938 = scalar_lea.sflag [#allocation15], %s937
          %s939 = sand.u32 %s283, 1
          %s940 = smul.addr %s939, 8
          %s941 = scalar_lea.vmem [#allocation14], %s940
          %942 = dma.done %s938, 128
        $region96: #{tpu_custom_call.1} parent=87 // pred_fallthru
          _
      $region88: #{tpu_custom_call.1} parent=5 // pred_fallthru
        _
    $region6: #{tpu_custom_call.1} parent=1 // loop_footer
      %s34 = sadd.s32 1, %s30
    $region7: #{tpu_custom_call.1} parent=1 // loop_footer_branch
      %29 = sbr.rel target = $region3
    $region8: #{tpu_custom_call.1} parent=1 // loop_exit
      _
    %943 = vsyncpa [#allocation3], 1
    %s944 = scalar_lea.sflag [#allocation3], 1
    %945 = vsyncpa %s944, 1
    %946 = vsyncpa [#allocation6], 1
    %s947 = scalar_lea.sflag [#allocation6], 1
    %948 = vsyncpa %s947, 1
    %949 = vsyncpa [#allocation9], 1
    %950 = vsyncpa [#allocation12], 1
    %951 = vsyncpa [#allocation4], 1
    %s952 = scalar_lea.sflag [#allocation4], 1
    %953 = vsyncpa %s952, 1
    %954 = vsyncpa [#allocation15], 1
    %s955 = scalar_lea.sflag [#allocation15], 1
    %956 = vsyncpa %s955, 1

// kernel: tpu_custom_call.1
$region0: #{tpu_custom_call.1}
  #allocation0 [shape = 'u32[]', space=smem, size = 0x4, offset = 0x4, fixed_abs, tag = 'smem constant byte address 0x4 - core index']
  #allocation1 [shape = 'u32[144,128]{1,0:T(1,128)}', space=vmem, size = 0x12000, scoped, tag = 'internal scratch']
  %s0 = inlined_call_operand.hbm [shape: f32[2,8,128], index: 0, kind: input, shape index: {}]
  %s1 = inlined_call_operand.hbm [shape: f32[2,8,128], index: 1, kind: input, shape index: {}]
  %s2 = inlined_call_operand.hbm [shape: f32[2,128,128], index: 2, kind: input, shape index: {}]
  %s3 = inlined_call_operand.hbm [shape: f32[2,128,128], index: 3, kind: input, shape index: {}]
  %s4 = inlined_call_operand.vmem [shape: f32[2,1,128], index: 4, kind: input, shape index: {}]
  %s5 = inlined_call_operand.hbm [shape: f32[128,128], index: 5, kind: input, shape index: {}]
  %s6 = inlined_call_operand.hbm [shape: f32[128,128], index: 6, kind: input, shape index: {}]
  %s7 = inlined_call_operand.vmem [shape: f32[1,128], index: 7, kind: input, shape index: {}]
  %s8 = inlined_call_operand.hbm [shape: f32[2,8,128], index: 8, kind: output, shape index: {0}]
  %s9 = inlined_call_operand.hbm [shape: f32[2,8,128], index: 9, kind: output, shape index: {1}]
  %10 = xla_tuple %s8, %s9
  %s11 = sld [smem:[#allocation0]]
  $region97: #{tpu_custom_call.1} parent=0
    _
  %s13 = ssub.s32 1, %s11
  %s14 = scalar_select 0, %s13, %s11
  $region1: #{tpu_custom_call.1} parent=0
    #allocation2 [shape = 'u8[8192]{0}', space=vmem, size = 0x2000, scoped, tag = 'input window, operand 0']
    #allocation3 [shape = 's32[2]{0}', space=sflag, size = 0x8, scoped, tag = 'scoped memory for tpu_custom_call.1']
    #allocation4 [shape = 's32[2]{0}', space=sflag, size = 0x8, scoped, tag = 'scoped memory for tpu_custom_call.1']
    #allocation5 [shape = 'u8[8192]{0}', space=vmem, size = 0x2000, scoped, tag = 'input window, operand 1']
    #allocation6 [shape = 's32[2]{0}', space=sflag, size = 0x8, scoped, tag = 'scoped memory for tpu_custom_call.1']
    #allocation7 [shape = 'u8[131072]{0}', space=vmem, size = 0x20000, scoped, tag = 'input window, operand 2']
    #allocation8 [shape = 'u8[131072]{0}', space=vmem, size = 0x20000, scoped, tag = 'input window, operand 3']
    #allocation9 [shape = 's32[2]{0}', space=sflag, size = 0x8, scoped, tag = 'scoped memory for tpu_custom_call.1']
    #allocation10 [shape = 'u8[65536]{0}', space=vmem, size = 0x10000, scoped, tag = 'input window, operand 5, single buffered']
    #allocation11 [shape = 'u8[65536]{0}', space=vmem, size = 0x10000, scoped, tag = 'input window, operand 6, single buffered']
    #allocation12 [shape = 's32[1]{0}', space=sflag, size = 0x4, scoped, tag = 'scoped memory for tpu_custom_call.1']
    #allocation13 [shape = 'u8[8192]{0}', space=vmem, size = 0x2000, scoped, tag = 'output window, operand 0']
    #allocation14 [shape = 'u8[8192]{0}', space=vmem, size = 0x2000, scoped, tag = 'output window, operand 1']
    #allocation15 [shape = 's32[2]{0}', space=sflag, size = 0x8, scoped, tag = 'scoped memory for tpu_custom_call.1']
    %15 = vsyncpa [#allocation3], 0
    %s16 = scalar_lea.sflag [#allocation3], 1
    %17 = vsyncpa %s16, 0
    %18 = vsyncpa [#allocation6], 0
    %s19 = scalar_lea.sflag [#allocation6], 1
    %20 = vsyncpa %s19, 0
    %21 = vsyncpa [#allocation9], 0
    %s22 = scalar_lea.sflag [#allocation9], 1
    %23 = vsyncpa %s22, 0
    %24 = vsyncpa [#allocation12], 0
    %25 = vsyncpa [#allocation4], 0
    %s26 = scalar_lea.sflag [#allocation4], 1
    %27 = vsyncpa %s26, 0
    %28 = vsyncpa [#allocation15], 0
    %s29 = scalar_lea.sflag [#allocation15], 1
    %30 = vsyncpa %s29, 0
    loop: start=0, step=1, limit=4
    $region2: #{tpu_custom_call.1} parent=1 // loop_pre_header
      _
    $region3: #{tpu_custom_call.1} parent=1 // loop_header
      %s32 = sphi 0, %s36
      %p33 = scmp.ge.s32.totalorder %s32, 4
      %s39 = sphi 0, %s51
      %s40 = sphi 0, %s47
      %s41 = sphi 0, %s39
      %s42 = sphi 0, %s40
      %s43 = sphi 0, %s41
      %s44 = sphi 0, %s42
      %s56 = sphi 0, %s58
      %s59 = sphi 0, %s56
      %s60 = sphi 0, %s59
      %s76 = sphi 0, %s60
      %s84 = sphi 0, %s86
      %s87 = sphi 0, %s84
      %s88 = sphi 0, %s87
      %s104 = sphi 0, %s88
      %s110 = sphi 0, %s112
      %s113 = sphi 0, %s110
      %s114 = sphi 0, %s113
      %s130 = sphi 0, %s114
      %s136 = sphi 0, %s138
      %s139 = sphi 0, %s136
      %s140 = sphi 0, %s139
      %s156 = sphi 0, %s140
      %s162 = sphi 0, %s164
      %s165 = sphi 0, %s162
      %s166 = sphi 0, %s165
      %s182 = sphi 0, %s166
      %s186 = sphi 0, %s186
      %s188 = sphi 0, %s186
      %s189 = sphi 0, %s188
      %s203 = sphi 0, %s189
      %s207 = sphi 0, %s207
      %s209 = sphi 0, %s207
      %s210 = sphi 0, %s209
      %s224 = sphi 0, %s210
      %s228 = sphi 0, %s228
      %s230 = sphi 0, %s228
      %s231 = sphi 0, %s230
      %s245 = sphi 0, %s231
      %s253 = sphi 0, %s255
      %s256 = sphi 0, %s253
      %s257 = sphi 0, %s256
      %s273 = sphi 0, %s257
      %s281 = sphi 0, %s283
      %s284 = sphi 0, %s281
      %s285 = sphi 0, %s284
      %s301 = sphi 0, %s285
    $region4: #{tpu_custom_call.1} parent=1 // loop_header_branch
      %35 = sbr.rel (%p33) target = $region8
    $region5: #{tpu_custom_call.1} parent=1 // loop_body
      %s37 = ssub.s32 %s32, 1
      %s38 = ssub.s32 %s32, 2
      %s45 = sadd.s32 1, %s40
      %p46 = scmp.ge.s32.totalorder %s45, 1
      %s47 = scalar_select %p46, 0, %s45
      %s48 = sadd.s32 1, %s39
      %s49 = scalar_select %p46, %s48, %s39
      %p50 = scmp.ge.s32.totalorder %s49, 2
      %s51 = scalar_select %p50, 0, %s49
      %s52 = ssub.s32 %s39, %s51
      %s53 = ssub.s32 %s40, %s47
      %s54 = sor.u32 %s52, %s53
      %p55 = scmp.eq.s32.totalorder %s54, 0
      %s57 = sadd.s32 %s56, 1
      %s58 = scalar_select %p55, %s56, %s57
      %p61 = pneg %p55
      %p62 = scmp.eq.s32.totalorder %s32, 1
      %p63 = por %p61, %p62
      %p64 = scmp.ne.s32.totalorder %s56, %s59
      %p65 = scmp.eq.s32.totalorder %s32, 0
      %p66 = por %p64, %p65
      %p67 = scmp.ne.s32.totalorder %s56, %s59
      %p68 = scmp.eq.s32.totalorder %s37, 1
      %p69 = por %p67, %p68
      %p70 = scmp.ne.s32.totalorder %s59, %s60
      %p71 = scmp.eq.s32.totalorder %s37, 0
      %p72 = por %p70, %p71
      %p73 = scmp.ne.s32.totalorder %s59, %s60
      %p74 = scmp.eq.s32.totalorder %s38, 1
      %p75 = por %p73, %p74
      %p77 = scmp.ne.s32.totalorder %s60, %s76
      %p78 = scmp.eq.s32.totalorder %s38, 0
      %p79 = por %p77, %p78
      %s80 = ssub.s32 %s39, %s51
      %s81 = ssub.s32 %s40, %s47
      %s82 = sor.u32 %s80, %s81
      %p83 = scmp.eq.s32.totalorder %s82, 0
      %s85 = sadd.s32 %s84, 1
      %s86 = scalar_select %p83, %s84, %s85
      %p89 = pneg %p83
      %p90 = scmp.eq.s32.totalorder %s32, 1
      %p91 = por %p89, %p90
      %p92 = scmp.ne.s32.totalorder %s84, %s87
      %p93 = scmp.eq.s32.totalorder %s32, 0
      %p94 = por %p92, %p93
      %p95 = scmp.ne.s32.totalorder %s84, %s87
      %p96 = scmp.eq.s32.totalorder %s37, 1
      %p97 = por %p95, %p96
      %p98 = scmp.ne.s32.totalorder %s87, %s88
      %p99 = scmp.eq.s32.totalorder %s37, 0
      %p100 = por %p98, %p99
      %p101 = scmp.ne.s32.totalorder %s87, %s88
      %p102 = scmp.eq.s32.totalorder %s38, 1
      %p103 = por %p101, %p102
      %p105 = scmp.ne.s32.totalorder %s88, %s104
      %p106 = scmp.eq.s32.totalorder %s38, 0
      %p107 = por %p105, %p106
      %s108 = ssub.s32 %s39, %s51
      %p109 = scmp.eq.s32.totalorder %s108, 0
      %s111 = sadd.s32 %s110, 1
      %s112 = scalar_select %p109, %s110, %s111
      %p115 = pneg %p109
      %p116 = scmp.eq.s32.totalorder %s32, 1
      %p117 = por %p115, %p116
      %p118 = scmp.ne.s32.totalorder %s110, %s113
      %p119 = scmp.eq.s32.totalorder %s32, 0
      %p120 = por %p118, %p119
      %p121 = scmp.ne.s32.totalorder %s110, %s113
      %p122 = scmp.eq.s32.totalorder %s37, 1
      %p123 = por %p121, %p122
      %p124 = scmp.ne.s32.totalorder %s113, %s114
      %p125 = scmp.eq.s32.totalorder %s37, 0
      %p126 = por %p124, %p125
      %p127 = scmp.ne.s32.totalorder %s113, %s114
      %p128 = scmp.eq.s32.totalorder %s38, 1
      %p129 = por %p127, %p128
      %p131 = scmp.ne.s32.totalorder %s114, %s130
      %p132 = scmp.eq.s32.totalorder %s38, 0
      %p133 = por %p131, %p132
      %s134 = ssub.s32 %s39, %s51
      %p135 = scmp.eq.s32.totalorder %s134, 0
      %s137 = sadd.s32 %s136, 1
      %s138 = scalar_select %p135, %s136, %s137
      %p141 = pneg %p135
      %p142 = scmp.eq.s32.totalorder %s32, 1
      %p143 = por %p141, %p142
      %p144 = scmp.ne.s32.totalorder %s136, %s139
      %p145 = scmp.eq.s32.totalorder %s32, 0
      %p146 = por %p144, %p145
      %p147 = scmp.ne.s32.totalorder %s136, %s139
      %p148 = scmp.eq.s32.totalorder %s37, 1
      %p149 = por %p147, %p148
      %p150 = scmp.ne.s32.totalorder %s139, %s140
      %p151 = scmp.eq.s32.totalorder %s37, 0
      %p152 = por %p150, %p151
      %p153 = scmp.ne.s32.totalorder %s139, %s140
      %p154 = scmp.eq.s32.totalorder %s38, 1
      %p155 = por %p153, %p154
      %p157 = scmp.ne.s32.totalorder %s140, %s156
      %p158 = scmp.eq.s32.totalorder %s38, 0
      %p159 = por %p157, %p158
      %s160 = ssub.s32 %s39, %s51
      %p161 = scmp.eq.s32.totalorder %s160, 0
      %s163 = sadd.s32 %s162, 1
      %s164 = scalar_select %p161, %s162, %s163
      %p167 = pneg %p161
      %p168 = scmp.eq.s32.totalorder %s32, 1
      %p169 = por %p167, %p168
      %p170 = scmp.ne.s32.totalorder %s162, %s165
      %p171 = scmp.eq.s32.totalorder %s32, 0
      %p172 = por %p170, %p171
      %p173 = scmp.ne.s32.totalorder %s162, %s165
      %p174 = scmp.eq.s32.totalorder %s37, 1
      %p175 = por %p173, %p174
      %p176 = scmp.ne.s32.totalorder %s165, %s166
      %p177 = scmp.eq.s32.totalorder %s37, 0
      %p178 = por %p176, %p177
      %p179 = scmp.ne.s32.totalorder %s165, %s166
      %p180 = scmp.eq.s32.totalorder %s38, 1
      %p181 = por %p179, %p180
      %p183 = scmp.ne.s32.totalorder %s166, %s182
      %p184 = scmp.eq.s32.totalorder %s38, 0
      %p185 = por %p183, %p184
      %s187 = sadd.s32 %s186, 1
      %p190 = scmp.eq.s32.totalorder %s32, 1
      %p191 = scmp.ne.s32.totalorder %s186, %s188
      %p192 = scmp.eq.s32.totalorder %s32, 0
      %p193 = por %p191, %p192
      %p194 = scmp.ne.s32.totalorder %s186, %s188
      %p195 = scmp.eq.s32.totalorder %s37, 1
      %p196 = por %p194, %p195
      %p197 = scmp.ne.s32.totalorder %s188, %s189
      %p198 = scmp.eq.s32.totalorder %s37, 0
      %p199 = por %p197, %p198
      %p200 = scmp.ne.s32.totalorder %s188, %s189
      %p201 = scmp.eq.s32.totalorder %s38, 1
      %p202 = por %p200, %p201
      %p204 = scmp.ne.s32.totalorder %s189, %s203
      %p205 = scmp.eq.s32.totalorder %s38, 0
      %p206 = por %p204, %p205
      %s208 = sadd.s32 %s207, 1
      %p211 = scmp.eq.s32.totalorder %s32, 1
      %p212 = scmp.ne.s32.totalorder %s207, %s209
      %p213 = scmp.eq.s32.totalorder %s32, 0
      %p214 = por %p212, %p213
      %p215 = scmp.ne.s32.totalorder %s207, %s209
      %p216 = scmp.eq.s32.totalorder %s37, 1
      %p217 = por %p215, %p216
      %p218 = scmp.ne.s32.totalorder %s209, %s210
      %p219 = scmp.eq.s32.totalorder %s37, 0
      %p220 = por %p218, %p219
      %p221 = scmp.ne.s32.totalorder %s209, %s210
      %p222 = scmp.eq.s32.totalorder %s38, 1
      %p223 = por %p221, %p222
      %p225 = scmp.ne.s32.totalorder %s210, %s224
      %p226 = scmp.eq.s32.totalorder %s38, 0
      %p227 = por %p225, %p226
      %s229 = sadd.s32 %s228, 1
      %p232 = scmp.eq.s32.totalorder %s32, 1
      %p233 = scmp.ne.s32.totalorder %s228, %s230
      %p234 = scmp.eq.s32.totalorder %s32, 0
      %p235 = por %p233, %p234
      %p236 = scmp.ne.s32.totalorder %s228, %s230
      %p237 = scmp.eq.s32.totalorder %s37, 1
      %p238 = por %p236, %p237
      %p239 = scmp.ne.s32.totalorder %s230, %s231
      %p240 = scmp.eq.s32.totalorder %s37, 0
      %p241 = por %p239, %p240
      %p242 = scmp.ne.s32.totalorder %s230, %s231
      %p243 = scmp.eq.s32.totalorder %s38, 1
      %p244 = por %p242, %p243
      %p246 = scmp.ne.s32.totalorder %s231, %s245
      %p247 = scmp.eq.s32.totalorder %s38, 0
      %p248 = por %p246, %p247
      %s249 = ssub.s32 %s39, %s51
      %s250 = ssub.s32 %s40, %s47
      %s251 = sor.u32 %s249, %s250
      %p252 = scmp.eq.s32.totalorder %s251, 0
      %s254 = sadd.s32 %s253, 1
      %s255 = scalar_select %p252, %s253, %s254
      %p258 = pneg %p252
      %p259 = scmp.eq.s32.totalorder %s32, 1
      %p260 = por %p258, %p259
      %p261 = scmp.ne.s32.totalorder %s253, %s256
      %p262 = scmp.eq.s32.totalorder %s32, 0
      %p263 = por %p261, %p262
      %p264 = scmp.ne.s32.totalorder %s253, %s256
      %p265 = scmp.eq.s32.totalorder %s37, 1
      %p266 = por %p264, %p265
      %p267 = scmp.ne.s32.totalorder %s256, %s257
      %p268 = scmp.eq.s32.totalorder %s37, 0
      %p269 = por %p267, %p268
      %p270 = scmp.ne.s32.totalorder %s256, %s257
      %p271 = scmp.eq.s32.totalorder %s38, 1
      %p272 = por %p270, %p271
      %p274 = scmp.ne.s32.totalorder %s257, %s273
      %p275 = scmp.eq.s32.totalorder %s38, 0
      %p276 = por %p274, %p275
      %s277 = ssub.s32 %s39, %s51
      %s278 = ssub.s32 %s40, %s47
      %s279 = sor.u32 %s277, %s278
      %p280 = scmp.eq.s32.totalorder %s279, 0
      %s282 = sadd.s32 %s281, 1
      %s283 = scalar_select %p280, %s281, %s282
      %p286 = pneg %p280
      %p287 = scmp.eq.s32.totalorder %s32, 1
      %p288 = por %p286, %p287
      %p289 = scmp.ne.s32.totalorder %s281, %s284
      %p290 = scmp.eq.s32.totalorder %s32, 0
      %p291 = por %p289, %p290
      %p292 = scmp.ne.s32.totalorder %s281, %s284
      %p293 = scmp.eq.s32.totalorder %s37, 1
      %p294 = por %p292, %p293
      %p295 = scmp.ne.s32.totalorder %s284, %s285
      %p296 = scmp.eq.s32.totalorder %s37, 0
      %p297 = por %p295, %p296
      %p298 = scmp.ne.s32.totalorder %s284, %s285
      %p299 = scmp.eq.s32.totalorder %s38, 1
      %p300 = por %p298, %p299
      %p302 = scmp.ne.s32.totalorder %s285, %s301
      %p303 = scmp.eq.s32.totalorder %s38, 0
      %p304 = por %p302, %p303
      %p305 = scmp.le.s32.totalorder 1, %s32
      %p306 = scmp.lt.s32.totalorder %s32, 3
      %p307 = pnand %p305, %p306
      %p308 = pneg %p307
      // Predicated region
      $region9: #{tpu_custom_call.1} parent=5 // pred_check
        _
      $region10: #{tpu_custom_call.1} parent=5 // pred_check_branch
        %310 = sbr.rel (%p307) target = $region12
      $region11: #{tpu_custom_call.1} parent=5 // pred_region
        %s311 = ssub.s32 %s32, 1
        // Predicated region
        $region13: #{tpu_custom_call.1} parent=11 // pred_check
          %p312 = pneg %p199
        $region14: #{tpu_custom_call.1} parent=11 // pred_check_branch
          %314 = sbr.rel (%p312) target = $region16
        $region15: #{tpu_custom_call.1} parent=11 // pred_region
          %s316 = ssub.s32 2048, 2048
          %317 = vsyncadd [#allocation9], %s316
          %s318 = sshll.u32 [#allocation10], 4
          %s319 = int_to_ptr.vmem [resolvable:$true] %s318
          %324 = dma.hbm_to_vmem [thread:$0]  %s5, 2048, %s319, [#allocation9], 128, 128, 8
        $region16: #{tpu_custom_call.1} parent=11 // pred_fallthru
          _
        // Predicated region
        $region17: #{tpu_custom_call.1} parent=11 // pred_check
          %p325 = pneg %p220
        $region18: #{tpu_custom_call.1} parent=11 // pred_check_branch
          %327 = sbr.rel (%p325) target = $region20
        $region19: #{tpu_custom_call.1} parent=11 // pred_region
          %s329 = ssub.s32 2048, 2048
          %330 = vsyncadd [#allocation12], %s329
          %s331 = sshll.u32 [#allocation11], 4
          %s332 = int_to_ptr.vmem [resolvable:$true] %s331
          %337 = dma.hbm_to_vmem [thread:$0]  %s6, 2048, %s332, [#allocation12], 128, 128, 8
        $region20: #{tpu_custom_call.1} parent=11 // pred_fallthru
          _
        // Predicated region
        $region21: #{tpu_custom_call.1} parent=11 // pred_check
          %p338 = pneg %p241
        $region22: #{tpu_custom_call.1} parent=11 // pred_check_branch
          %340 = sbr.rel (%p338) target = $region24
        $region23: #{tpu_custom_call.1} parent=11 // pred_region
          _
        $region24: #{tpu_custom_call.1} parent=11 // pred_fallthru
          _
      $region12: #{tpu_custom_call.1} parent=5 // pred_fallthru
        _
      %p341 = scmp.lt.s32.totalorder %s32, 2
      // Predicated region
      $region25: #{tpu_custom_call.1} parent=5 // pred_check
        %p342 = pneg %p341
      $region26: #{tpu_custom_call.1} parent=5 // pred_check_branch
        %344 = sbr.rel (%p342) target = $region28
      $region27: #{tpu_custom_call.1} parent=5 // pred_region
        // Predicated region
        $region29: #{tpu_custom_call.1} parent=27 // pred_check
          %p345 = pneg %p66
        $region30: #{tpu_custom_call.1} parent=27 // pred_check_branch
          %347 = sbr.rel (%p345) target = $region32
        $region31: #{tpu_custom_call.1} parent=27 // pred_region
          %s348 = sand.u32 %s56, 1
          %s349 = scalar_lea.sflag [#allocation3], %s348
          %s350 = sand.u32 %s56, 1
          %s351 = smul.addr %s350, 8
          %s352 = scalar_lea.vmem [#allocation2], %s351
          %s354 = ssub.s32 128, 128
          %355 = vsyncadd %s349, %s354
          %s356 = sadd.s32 %s40, %s39
          %s357 = smul.addr %s356, 128
          %s358 = scalar_lea.hbm %s0, %s357
          %s360 = sshll.u32 %s352, 4
          %s361 = int_to_ptr.vmem [resolvable:$true] %s360
          %363 = dma.hbm_to_vmem [thread:$0]  %s358, 128, %s361, %s349
        $region32: #{tpu_custom_call.1} parent=27 // pred_fallthru
          _
        // Predicated region
        $region33: #{tpu_custom_call.1} parent=27 // pred_check
          %p364 = pneg %p94
        $region34: #{tpu_custom_call.1} parent=27 // pred_check_branch
          %366 = sbr.rel (%p364) target = $region36
        $region35: #{tpu_custom_call.1} parent=27 // pred_region
          %s367 = sand.u32 %s32, 1
          %s368 = scalar_lea.sflag [#allocation6], %s367
          %s369 = sand.u32 %s84, 1
          %s370 = smul.addr %s369, 8
          %s371 = scalar_lea.vmem [#allocation5], %s370
          %s373 = ssub.s32 128, 128
          %374 = vsyncadd %s368, %s373
          %s375 = sadd.s32 %s40, %s39
          %s376 = smul.addr %s375, 128
          %s377 = scalar_lea.hbm %s1, %s376
          %s379 = sshll.u32 %s371, 4
          %s380 = int_to_ptr.vmem [resolvable:$true] %s379
          %382 = dma.hbm_to_vmem [thread:$0]  %s377, 128, %s380, %s368
        $region36: #{tpu_custom_call.1} parent=27 // pred_fallthru
          _
        // Predicated region
        $region37: #{tpu_custom_call.1} parent=27 // pred_check
          %p383 = pneg %p120
        $region38: #{tpu_custom_call.1} parent=27 // pred_check_branch
          %385 = sbr.rel (%p383) target = $region40
        $region39: #{tpu_custom_call.1} parent=27 // pred_region
          %s386 = sand.u32 %s32, 1
          %s387 = scalar_lea.sflag [#allocation6], %s386
          %s388 = sand.u32 %s110, 1
          %s389 = smul.addr %s388, 128
          %s390 = scalar_lea.vmem [#allocation7], %s389
          %s392 = ssub.s32 2048, 2048
          %393 = vsyncadd %s387, %s392
          %s394 = smul.addr %s39, 16
          %s395 = smul.addr %s394, 128
          %s396 = scalar_lea.hbm %s2, %s395
          %s397 = sshll.u32 %s390, 4
          %s398 = int_to_ptr.vmem [resolvable:$true] %s397
          %403 = dma.hbm_to_vmem [thread:$0]  %s396, 2048, %s398, %s387, 128, 128, 8
        $region40: #{tpu_custom_call.1} parent=27 // pred_fallthru
          _
        // Predicated region
        $region41: #{tpu_custom_call.1} parent=27 // pred_check
          %p404 = pneg %p146
        $region42: #{tpu_custom_call.1} parent=27 // pred_check_branch
          %406 = sbr.rel (%p404) target = $region44
        $region43: #{tpu_custom_call.1} parent=27 // pred_region
          %s407 = sand.u32 %s32, 1
          %s408 = scalar_lea.sflag [#allocation9], %s407
          %s409 = sand.u32 %s136, 1
          %s410 = smul.addr %s409, 128
          %s411 = scalar_lea.vmem [#allocation8], %s410
          %s413 = ssub.s32 2048, 2048
          %414 = vsyncadd %s408, %s413
          %s415 = smul.addr %s39, 16
          %s416 = smul.addr %s415, 128
          %s417 = scalar_lea.hbm %s3, %s416
          %s418 = sshll.u32 %s411, 4
          %s419 = int_to_ptr.vmem [resolvable:$true] %s418
          %424 = dma.hbm_to_vmem [thread:$0]  %s417, 2048, %s419, %s408, 128, 128, 8
        $region44: #{tpu_custom_call.1} parent=27 // pred_fallthru
          _
        // Predicated region
        $region45: #{tpu_custom_call.1} parent=27 // pred_check
          %p425 = pneg %p172
        $region46: #{tpu_custom_call.1} parent=27 // pred_check_branch
          %427 = sbr.rel (%p425) target = $region48
        $region47: #{tpu_custom_call.1} parent=27 // pred_region
          %p428 = scmp.lt.s32.totalorder %s39, 1
          %s429 = scalar_select %p428, %s39, 1
          %s430 = scalar_lea.vmem %s4, %s429
        $region48: #{tpu_custom_call.1} parent=27 // pred_fallthru
          _
      $region28: #{tpu_custom_call.1} parent=5 // pred_fallthru
        _
      %p431 = scmp.le.s32.totalorder 1, %s32
      %p432 = scmp.lt.s32.totalorder %s32, 3
      %p433 = pnand %p431, %p432
      %p434 = pneg %p433
      // Predicated region
      $region49: #{tpu_custom_call.1} parent=5 // pred_check
        _
      $region50: #{tpu_custom_call.1} parent=5 // pred_check_branch
        %436 = sbr.rel (%p433) target = $region52
      $region51: #{tpu_custom_call.1} parent=5 // pred_region
        %s437 = ssub.s32 %s32, 1
        %s438 = sand.u32 %s59, 1
        %s439 = scalar_lea.sflag [#allocation3], %s438
        %s440 = sand.u32 %s59, 1
        %s441 = smul.addr %s440, 8
        %s442 = scalar_lea.vmem [#allocation2], %s441
        // Predicated region
        $region53: #{tpu_custom_call.1} parent=51 // pred_check
          %p443 = pneg %p72
        $region54: #{tpu_custom_call.1} parent=51 // pred_check_branch
          %445 = sbr.rel (%p443) target = $region56
        $region55: #{tpu_custom_call.1} parent=51 // pred_region
          %446 = dma.done %s439, 128
        $region56: #{tpu_custom_call.1} parent=51 // pred_fallthru
          _
        %s447 = sand.u32 %s37, 1
        %s448 = scalar_lea.sflag [#allocation6], %s447
        %s449 = sand.u32 %s87, 1
        %s450 = smul.addr %s449, 8
        %s451 = scalar_lea.vmem [#allocation5], %s450
        // Predicated region
        $region57: #{tpu_custom_call.1} parent=51 // pred_check
          %p452 = pneg %p100
        $region58: #{tpu_custom_call.1} parent=51 // pred_check_branch
          %454 = sbr.rel (%p452) target = $region60
        $region59: #{tpu_custom_call.1} parent=51 // pred_region
          %455 = dma.done %s448, 128
        $region60: #{tpu_custom_call.1} parent=51 // pred_fallthru
          _
        %s456 = sand.u32 %s37, 1
        %s457 = scalar_lea.sflag [#allocation6], %s456
        %s458 = sand.u32 %s113, 1
        %s459 = smul.addr %s458, 128
        %s460 = scalar_lea.vmem [#allocation7], %s459
        // Predicated region
        $region61: #{tpu_custom_call.1} parent=51 // pred_check
          %p461 = pneg %p126
        $region62: #{tpu_custom_call.1} parent=51 // pred_check_branch
          %463 = sbr.rel (%p461) target = $region64
        $region63: #{tpu_custom_call.1} parent=51 // pred_region
          %464 = dma.done %s457, 2048
        $region64: #{tpu_custom_call.1} parent=51 // pred_fallthru
          _
        %s465 = sand.u32 %s37, 1
        %s466 = scalar_lea.sflag [#allocation9], %s465
        %s467 = sand.u32 %s139, 1
        %s468 = smul.addr %s467, 128
        %s469 = scalar_lea.vmem [#allocation8], %s468
        // Predicated region
        $region65: #{tpu_custom_call.1} parent=51 // pred_check
          %p470 = pneg %p152
        $region66: #{tpu_custom_call.1} parent=51 // pred_check_branch
          %472 = sbr.rel (%p470) target = $region68
        $region67: #{tpu_custom_call.1} parent=51 // pred_region
          %473 = dma.done %s466, 2048
        $region68: #{tpu_custom_call.1} parent=51 // pred_fallthru
          _
        // Predicated region
        $region69: #{tpu_custom_call.1} parent=51 // pred_check
          %p474 = pneg %p199
        $region70: #{tpu_custom_call.1} parent=51 // pred_check_branch
          %476 = sbr.rel (%p474) target = $region72
        $region71: #{tpu_custom_call.1} parent=51 // pred_region
          %477 = dma.done [#allocation9], 2048
        $region72: #{tpu_custom_call.1} parent=51 // pred_fallthru
          _
        // Predicated region
        $region73: #{tpu_custom_call.1} parent=51 // pred_check
          %p478 = pneg %p220
        $region74: #{tpu_custom_call.1} parent=51 // pred_check_branch
          %480 = sbr.rel (%p478) target = $region76
        $region75: #{tpu_custom_call.1} parent=51 // pred_region
          %481 = dma.done [#allocation12], 2048
        $region76: #{tpu_custom_call.1} parent=51 // pred_fallthru
          _
        %s482 = sand.u32 %s59, 1
        %s483 = scalar_lea.sflag [#allocation3], %s482
        %s484 = sand.u32 %s59, 1
        %s485 = smul.addr %s484, 8
        %s486 = scalar_lea.vmem [#allocation2], %s485
        %p487 = pneg %p72
        %p488 = pneg %p69
        %s489 = sand.u32 %s37, 1
        %s490 = scalar_lea.sflag [#allocation6], %s489
        %s491 = sand.u32 %s87, 1
        %s492 = smul.addr %s491, 8
        %s493 = scalar_lea.vmem [#allocation5], %s492
        %p494 = pneg %p100
        %p495 = pneg %p97
        %s496 = sand.u32 %s37, 1
        %s497 = scalar_lea.sflag [#allocation6], %s496
        %s498 = sand.u32 %s113, 1
        %s499 = smul.addr %s498, 128
        %s500 = scalar_lea.vmem [#allocation7], %s499
        %p501 = pneg %p126
        %p502 = pneg %p123
        %s503 = sand.u32 %s37, 1
        %s504 = scalar_lea.sflag [#allocation9], %s503
        %s505 = sand.u32 %s139, 1
        %s506 = smul.addr %s505, 128
        %s507 = scalar_lea.vmem [#allocation8], %s506
        %p508 = pneg %p152
        %p509 = pneg %p149
        %p510 = scmp.lt.s32.totalorder %s41, 1
        %s511 = scalar_select %p510, %s41, 1
        %s512 = scalar_lea.vmem %s4, %s511
        %p513 = pneg %p178
        %p514 = pneg %p175
        %p515 = pneg %p199
        %p516 = pneg %p196
        %p517 = pneg %p220
        %p518 = pneg %p217
        %p519 = pneg %p241
        %p520 = pneg %p238
        %p521 = pneg %p269
        %p522 = pneg %p266
        %s523 = sand.u32 %s256, 1
        %s524 = scalar_lea.sflag [#allocation4], %s523
        %s525 = sand.u32 %s256, 1
        %s526 = smul.addr %s525, 8
        %s527 = scalar_lea.vmem [#allocation13], %s526
        %p528 = pneg %p297
        %p529 = pneg %p294
        %s530 = sand.u32 %s284, 1
        %s531 = scalar_lea.sflag [#allocation15], %s530
        %s532 = sand.u32 %s284, 1
        %s533 = smul.addr %s532, 8
        %s534 = scalar_lea.vmem [#allocation14], %s533
        %p535 = scmp.lt.s32.totalorder %s41, 1
        %s536 = scalar_select %p535, %s41, 1
        %s537 = scalar_lea.vmem %s4, %s536
        %v538 = vld [vmem:[%s442] sm:$0xff]
        %v539 = vld [vmem:[#allocation10] sm:$0xff]
        %v540 = vld [vmem:[#allocation10 + $0x8] sm:$0xff]
        %v541 = vld [vmem:[#allocation10 + $0x10] sm:$0xff]
        %v542 = vld [vmem:[#allocation10 + $0x18] sm:$0xff]
        %v543 = vld [vmem:[#allocation10 + $0x20] sm:$0xff]
        %v544 = vld [vmem:[#allocation10 + $0x28] sm:$0xff]
        %v545 = vld [vmem:[#allocation10 + $0x30] sm:$0xff]
        %v546 = vld [vmem:[#allocation10 + $0x38] sm:$0xff]
        %v547 = vld [vmem:[#allocation10 + $0x40] sm:$0xff]
        %v548 = vld [vmem:[#allocation10 + $0x48] sm:$0xff]
        %v549 = vld [vmem:[#allocation10 + $0x50] sm:$0xff]
        %v550 = vld [vmem:[#allocation10 + $0x58] sm:$0xff]
        %v551 = vld [vmem:[#allocation10 + $0x60] sm:$0xff]
        %v552 = vld [vmem:[#allocation10 + $0x68] sm:$0xff]
        %v553 = vld [vmem:[#allocation10 + $0x70] sm:$0xff]
        %v554 = vld [vmem:[#allocation10 + $0x78] sm:$0xff]
        %v555 = vld [vmem:[%s451] sm:$0xff]
        %556 = vmatprep.subr.mxu0 0.0
        %557 = vmatpush1.msra.mxu0 %v554
        %558 = vmatprep.subr.mxu0 0.0
        %559 = vmatpush1.msra.mxu0 %v553
        %560 = vmatprep.subr.mxu0 0.0
        %561 = vmatpush1.msra.mxu0 %v552
        %562 = vmatprep.subr.mxu0 0.0
        %563 = vmatpush1.msra.mxu0 %v551
        %564 = vmatprep.subr.mxu0 0.0
        %565 = vmatpush1.msra.mxu0 %v550
        %566 = vmatprep.subr.mxu0 0.0
        %567 = vmatpush1.msra.mxu0 %v549
        %568 = vmatprep.subr.mxu0 0.0
        %569 = vmatpush1.msra.mxu0 %v548
        %570 = vmatprep.subr.mxu0 0.0
        %571 = vmatpush1.msra.mxu0 %v547
        %572 = vmatprep.subr.mxu0 0.0
        %573 = vmatpush1.msra.mxu0 %v546
        %574 = vmatprep.subr.mxu0 0.0
        %575 = vmatpush1.msra.mxu0 %v545
        %576 = vmatprep.subr.mxu0 0.0
        %577 = vmatpush1.msra.mxu0 %v544
        %578 = vmatprep.subr.mxu0 0.0
        %579 = vmatpush1.msra.mxu0 %v543
        %580 = vmatprep.subr.mxu0 0.0
        %581 = vmatpush1.msra.mxu0 %v542
        %582 = vmatprep.subr.mxu0 0.0
        %583 = vmatpush1.msra.mxu0 %v541
        %584 = vmatprep.subr.mxu0 0.0
        %585 = vmatpush1.msra.mxu0 %v540
        %586 = vmatprep.subr.mxu0 0.0
        %587 = vmatpush1.msra.mxu0 %v539
        %588 = vmatprep.subr.mxu0 0.0
        %589 = vmatpush2.msra.mxu0 0.0
        %590 = vmatprep.subr.mxu0 0.0
        %591 = vmatpush2.msra.mxu0 0.0
        %592 = vmatprep.subr.mxu0 0.0
        %593 = vmatpush2.msra.mxu0 0.0
        %594 = vmatprep.subr.mxu0 0.0
        %595 = vmatpush2.msra.mxu0 0.0
        %596 = vmatprep.subr.mxu0 0.0
        %597 = vmatpush2.msra.mxu0 0.0
        %598 = vmatprep.subr.mxu0 0.0
        %599 = vmatpush2.msra.mxu0 0.0
        %600 = vmatprep.subr.mxu0 0.0
        %601 = vmatpush2.msra.mxu0 0.0
        %602 = vmatprep.subr.mxu0 0.0
        %603 = vmatpush2.msra.mxu0 0.0
        %604 = vmatprep.subr.mxu0 0.0
        %605 = vmatpush2.msra.mxu0 0.0
        %606 = vmatprep.subr.mxu0 0.0
        %607 = vmatpush2.msra.mxu0 0.0
        %608 = vmatprep.subr.mxu0 0.0
        %609 = vmatpush2.msra.mxu0 0.0
        %610 = vmatprep.subr.mxu0 0.0
        %611 = vmatpush2.msra.mxu0 0.0
        %612 = vmatprep.subr.mxu0 0.0
        %613 = vmatpush2.msra.mxu0 0.0
        %614 = vmatprep.subr.mxu0 0.0
        %615 = vmatpush2.msra.mxu0 0.0
        %616 = vmatprep.subr.mxu0 0.0
        %617 = vmatpush2.msra.mxu0 0.0
        %618 = vmatprep.subr.mxu0 0.0
        %619 = vmatpush2.msra.mxu0 0.0
        %620 = vmatprep.mubr.f32.mxu0 0.0
        %621 = vmatmul.mubr.f32.gmra.mxu0 %v538
        %v622 = vpop.f32.mrf.mxu0
        %v623 = vadd.f32 %v555, %v622
        %v624 = vpop.f32.mrf.mxu0
        %625 = vdwg.mxu0
        %v626 = vld [vmem:[%s460] sm:$0xff]
        %v627 = vld [vmem:[%s460 + $0x8] sm:$0xff]
        %v628 = vld [vmem:[%s460 + $0x10] sm:$0xff]
        %v629 = vld [vmem:[%s460 + $0x18] sm:$0xff]
        %v630 = vld [vmem:[%s460 + $0x20] sm:$0xff]
        %v631 = vld [vmem:[%s460 + $0x28] sm:$0xff]
        %v632 = vld [vmem:[%s460 + $0x30] sm:$0xff]
        %v633 = vld [vmem:[%s460 + $0x38] sm:$0xff]
        %v634 = vld [vmem:[%s460 + $0x40] sm:$0xff]
        %v635 = vld [vmem:[%s460 + $0x48] sm:$0xff]
        %v636 = vld [vmem:[%s460 + $0x50] sm:$0xff]
        %v637 = vld [vmem:[%s460 + $0x58] sm:$0xff]
        %v638 = vld [vmem:[%s460 + $0x60] sm:$0xff]
        %v639 = vld [vmem:[%s460 + $0x68] sm:$0xff]
        %v640 = vld [vmem:[%s460 + $0x70] sm:$0xff]
        %v641 = vld [vmem:[%s460 + $0x78] sm:$0xff]
        %v642 = vld [vmem:[%s537] sm:$0x1]
        %v644 = vlaneseq
        %v645 = vshrl.u32 %v644, 7
        %v646 = vsub.s32 0, %v645
        %v647 = vrot.slane %v642, %v646
        %649 = vmatprep.subr.mxu0 0.0
        %650 = vmatpush1.msra.mxu0 %v641
        %651 = vmatprep.subr.mxu0 0.0
        %652 = vmatpush1.msra.mxu0 %v640
        %653 = vmatprep.subr.mxu0 0.0
        %654 = vmatpush1.msra.mxu0 %v639
        %655 = vmatprep.subr.mxu0 0.0
        %656 = vmatpush1.msra.mxu0 %v638
        %657 = vmatprep.subr.mxu0 0.0
        %658 = vmatpush1.msra.mxu0 %v637
        %659 = vmatprep.subr.mxu0 0.0
        %660 = vmatpush1.msra.mxu0 %v636
        %661 = vmatprep.subr.mxu0 0.0
        %662 = vmatpush1.msra.mxu0 %v635
        %663 = vmatprep.subr.mxu0 0.0
        %664 = vmatpush1.msra.mxu0 %v634
        %665 = vmatprep.subr.mxu0 0.0
        %666 = vmatpush1.msra.mxu0 %v633
        %667 = vmatprep.subr.mxu0 0.0
        %668 = vmatpush1.msra.mxu0 %v632
        %669 = vmatprep.subr.mxu0 0.0
        %670 = vmatpush1.msra.mxu0 %v631
        %671 = vmatprep.subr.mxu0 0.0
        %672 = vmatpush1.msra.mxu0 %v630
        %673 = vmatprep.subr.mxu0 0.0
        %674 = vmatpush1.msra.mxu0 %v629
        %675 = vmatprep.subr.mxu0 0.0
        %676 = vmatpush1.msra.mxu0 %v628
        %677 = vmatprep.subr.mxu0 0.0
        %678 = vmatpush1.msra.mxu0 %v627
        %679 = vmatprep.subr.mxu0 0.0
        %680 = vmatpush1.msra.mxu0 %v626
        %681 = vmatprep.subr.mxu0 0.0
        %682 = vmatpush2.msra.mxu0 0.0
        %683 = vmatprep.subr.mxu0 0.0
        %684 = vmatpush2.msra.mxu0 0.0
        %685 = vmatprep.subr.mxu0 0.0
        %686 = vmatpush2.msra.mxu0 0.0
        %687 = vmatprep.subr.mxu0 0.0
        %688 = vmatpush2.msra.mxu0 0.0
        %689 = vmatprep.subr.mxu0 0.0
        %690 = vmatpush2.msra.mxu0 0.0
        %691 = vmatprep.subr.mxu0 0.0
        %692 = vmatpush2.msra.mxu0 0.0
        %693 = vmatprep.subr.mxu0 0.0
        %694 = vmatpush2.msra.mxu0 0.0
        %695 = vmatprep.subr.mxu0 0.0
        %696 = vmatpush2.msra.mxu0 0.0
        %697 = vmatprep.subr.mxu0 0.0
        %698 = vmatpush2.msra.mxu0 0.0
        %699 = vmatprep.subr.mxu0 0.0
        %700 = vmatpush2.msra.mxu0 0.0
        %701 = vmatprep.subr.mxu0 0.0
        %702 = vmatpush2.msra.mxu0 0.0
        %703 = vmatprep.subr.mxu0 0.0
        %704 = vmatpush2.msra.mxu0 0.0
        %705 = vmatprep.subr.mxu0 0.0
        %706 = vmatpush2.msra.mxu0 0.0
        %707 = vmatprep.subr.mxu0 0.0
        %708 = vmatpush2.msra.mxu0 0.0
        %709 = vmatprep.subr.mxu0 0.0
        %710 = vmatpush2.msra.mxu0 0.0
        %711 = vmatprep.subr.mxu0 0.0
        %712 = vmatpush2.msra.mxu0 0.0
        %713 = vmatprep.mubr.f32.mxu0 0.0
        %714 = vmatmul.mubr.f32.gmra.mxu0 %v623
        %v715 = vpop.f32.mrf.mxu0
        %v716 = vadd.f32 %v647, %v715
        %v717 = vpop.f32.mrf.mxu0
        %718 = vdwg.mxu0
        %719 = vmax.xlane.f32.xlu0 %v716
        %v720 = vpop.xlane.xlu0 %719
        %v721 = vsub.f32 %v716, %v720
        %v722 = vmul.f32 %v721, 1.442695
        %v723 = vpow.pop %v722
        %724 = vadd.xlane.f32.xlu0 %v723
        %v725 = vpop.xlane.xlu0 %724
        %v726 = vrcp.pop %v725
        %v727 = vmul.f32 %v725, %v726
        %v728 = vsub.f32 2.0, %v727
        %v729 = vmul.f32 %v726, %v728
        %v730 = vmul.f32 %v723, %v729
        %731 = vst [vmem:[%s534] sm:$0xff] %v730
        %v732 = vld [vmem:[%s469] sm:$0xff]
        %v733 = vld [vmem:[%s469 + $0x8] sm:$0xff]
        %v734 = vld [vmem:[%s469 + $0x10] sm:$0xff]
        %v735 = vld [vmem:[%s469 + $0x18] sm:$0xff]
        %v736 = vld [vmem:[%s469 + $0x20] sm:$0xff]
        %v737 = vld [vmem:[%s469 + $0x28] sm:$0xff]
        %v738 = vld [vmem:[%s469 + $0x30] sm:$0xff]
        %v739 = vld [vmem:[%s469 + $0x38] sm:$0xff]
        %v740 = vld [vmem:[%s469 + $0x40] sm:$0xff]
        %v741 = vld [vmem:[%s469 + $0x48] sm:$0xff]
        %v742 = vld [vmem:[%s469 + $0x50] sm:$0xff]
        %v743 = vld [vmem:[%s469 + $0x58] sm:$0xff]
        %v744 = vld [vmem:[%s469 + $0x60] sm:$0xff]
        %v745 = vld [vmem:[%s469 + $0x68] sm:$0xff]
        %v746 = vld [vmem:[%s469 + $0x70] sm:$0xff]
        %v747 = vld [vmem:[%s469 + $0x78] sm:$0xff]
        %748 = vmatprep.subr.mxu0 0.0
        %749 = vmatpush1.msra.mxu0 %v747
        %750 = vmatprep.subr.mxu0 0.0
        %751 = vmatpush1.msra.mxu0 %v746
        %752 = vmatprep.subr.mxu0 0.0
        %753 = vmatpush1.msra.mxu0 %v745
        %754 = vmatprep.subr.mxu0 0.0
        %755 = vmatpush1.msra.mxu0 %v744
        %756 = vmatprep.subr.mxu0 0.0
        %757 = vmatpush1.msra.mxu0 %v743
        %758 = vmatprep.subr.mxu0 0.0
        %759 = vmatpush1.msra.mxu0 %v742
        %760 = vmatprep.subr.mxu0 0.0
        %761 = vmatpush1.msra.mxu0 %v741
        %762 = vmatprep.subr.mxu0 0.0
        %763 = vmatpush1.msra.mxu0 %v740
        %764 = vmatprep.subr.mxu0 0.0
        %765 = vmatpush1.msra.mxu0 %v739
        %766 = vmatprep.subr.mxu0 0.0
        %767 = vmatpush1.msra.mxu0 %v738
        %768 = vmatprep.subr.mxu0 0.0
        %769 = vmatpush1.msra.mxu0 %v737
        %770 = vmatprep.subr.mxu0 0.0
        %771 = vmatpush1.msra.mxu0 %v736
        %772 = vmatprep.subr.mxu0 0.0
        %773 = vmatpush1.msra.mxu0 %v735
        %774 = vmatprep.subr.mxu0 0.0
        %775 = vmatpush1.msra.mxu0 %v734
        %776 = vmatprep.subr.mxu0 0.0
        %777 = vmatpush1.msra.mxu0 %v733
        %778 = vmatprep.subr.mxu0 0.0
        %779 = vmatpush1.msra.mxu0 %v732
        %780 = vmatprep.subr.mxu0 0.0
        %781 = vmatpush2.msra.mxu0 0.0
        %782 = vmatprep.subr.mxu0 0.0
        %783 = vmatpush2.msra.mxu0 0.0
        %784 = vmatprep.subr.mxu0 0.0
        %785 = vmatpush2.msra.mxu0 0.0
        %786 = vmatprep.subr.mxu0 0.0
        %787 = vmatpush2.msra.mxu0 0.0
        %788 = vmatprep.subr.mxu0 0.0
        %789 = vmatpush2.msra.mxu0 0.0
        %790 = vmatprep.subr.mxu0 0.0
        %791 = vmatpush2.msra.mxu0 0.0
        %792 = vmatprep.subr.mxu0 0.0
        %793 = vmatpush2.msra.mxu0 0.0
        %794 = vmatprep.subr.mxu0 0.0
        %795 = vmatpush2.msra.mxu0 0.0
        %796 = vmatprep.subr.mxu0 0.0
        %797 = vmatpush2.msra.mxu0 0.0
        %798 = vmatprep.subr.mxu0 0.0
        %799 = vmatpush2.msra.mxu0 0.0
        %800 = vmatprep.subr.mxu0 0.0
        %801 = vmatpush2.msra.mxu0 0.0
        %802 = vmatprep.subr.mxu0 0.0
        %803 = vmatpush2.msra.mxu0 0.0
        %804 = vmatprep.subr.mxu0 0.0
        %805 = vmatpush2.msra.mxu0 0.0
        %806 = vmatprep.subr.mxu0 0.0
        %807 = vmatpush2.msra.mxu0 0.0
        %808 = vmatprep.subr.mxu0 0.0
        %809 = vmatpush2.msra.mxu0 0.0
        %810 = vmatprep.subr.mxu0 0.0
        %811 = vmatpush2.msra.mxu0 0.0
        %812 = vmatprep.mubr.f32.mxu0 0.0
        %813 = vmatmul.mubr.f32.gmra.mxu0 %v730
        %v814 = vpop.f32.mrf.mxu0
        %v815 = vadd.f32 0.0, %v814
        %v816 = vpop.f32.mrf.mxu0
        %817 = vdwg.mxu0
        %v818 = vld [vmem:[#allocation11] sm:$0xff]
        %v819 = vld [vmem:[#allocation11 + $0x8] sm:$0xff]
        %v820 = vld [vmem:[#allocation11 + $0x10] sm:$0xff]
        %v821 = vld [vmem:[#allocation11 + $0x18] sm:$0xff]
        %v822 = vld [vmem:[#allocation11 + $0x20] sm:$0xff]
        %v823 = vld [vmem:[#allocation11 + $0x28] sm:$0xff]
        %v824 = vld [vmem:[#allocation11 + $0x30] sm:$0xff]
        %v825 = vld [vmem:[#allocation11 + $0x38] sm:$0xff]
        %v826 = vld [vmem:[#allocation11 + $0x40] sm:$0xff]
        %v827 = vld [vmem:[#allocation11 + $0x48] sm:$0xff]
        %v828 = vld [vmem:[#allocation11 + $0x50] sm:$0xff]
        %v829 = vld [vmem:[#allocation11 + $0x58] sm:$0xff]
        %v830 = vld [vmem:[#allocation11 + $0x60] sm:$0xff]
        %v831 = vld [vmem:[#allocation11 + $0x68] sm:$0xff]
        %v832 = vld [vmem:[#allocation11 + $0x70] sm:$0xff]
        %v833 = vld [vmem:[#allocation11 + $0x78] sm:$0xff]
        %v834 = vld [vmem:[%s7] sm:$0x1]
        %v836 = vlaneseq
        %v837 = vshrl.u32 %v836, 7
        %v838 = vsub.s32 0, %v837
        %v839 = vrot.slane %v834, %v838
        %841 = vmatprep.subr.mxu0 0.0
        %842 = vmatpush1.msra.mxu0 %v833
        %843 = vmatprep.subr.mxu0 0.0
        %844 = vmatpush1.msra.mxu0 %v832
        %845 = vmatprep.subr.mxu0 0.0
        %846 = vmatpush1.msra.mxu0 %v831
        %847 = vmatprep.subr.mxu0 0.0
        %848 = vmatpush1.msra.mxu0 %v830
        %849 = vmatprep.subr.mxu0 0.0
        %850 = vmatpush1.msra.mxu0 %v829
        %851 = vmatprep.subr.mxu0 0.0
        %852 = vmatpush1.msra.mxu0 %v828
        %853 = vmatprep.subr.mxu0 0.0
        %854 = vmatpush1.msra.mxu0 %v827
        %855 = vmatprep.subr.mxu0 0.0
        %856 = vmatpush1.msra.mxu0 %v826
        %857 = vmatprep.subr.mxu0 0.0
        %858 = vmatpush1.msra.mxu0 %v825
        %859 = vmatprep.subr.mxu0 0.0
        %860 = vmatpush1.msra.mxu0 %v824
        %861 = vmatprep.subr.mxu0 0.0
        %862 = vmatpush1.msra.mxu0 %v823
        %863 = vmatprep.subr.mxu0 0.0
        %864 = vmatpush1.msra.mxu0 %v822
        %865 = vmatprep.subr.mxu0 0.0
        %866 = vmatpush1.msra.mxu0 %v821
        %867 = vmatprep.subr.mxu0 0.0
        %868 = vmatpush1.msra.mxu0 %v820
        %869 = vmatprep.subr.mxu0 0.0
        %870 = vmatpush1.msra.mxu0 %v819
        %871 = vmatprep.subr.mxu0 0.0
        %872 = vmatpush1.msra.mxu0 %v818
        %873 = vmatprep.subr.mxu0 0.0
        %874 = vmatpush2.msra.mxu0 0.0
        %875 = vmatprep.subr.mxu0 0.0
        %876 = vmatpush2.msra.mxu0 0.0
        %877 = vmatprep.subr.mxu0 0.0
        %878 = vmatpush2.msra.mxu0 0.0
        %879 = vmatprep.subr.mxu0 0.0
        %880 = vmatpush2.msra.mxu0 0.0
        %881 = vmatprep.subr.mxu0 0.0
        %882 = vmatpush2.msra.mxu0 0.0
        %883 = vmatprep.subr.mxu0 0.0
        %884 = vmatpush2.msra.mxu0 0.0
        %885 = vmatprep.subr.mxu0 0.0
        %886 = vmatpush2.msra.mxu0 0.0
        %887 = vmatprep.subr.mxu0 0.0
        %888 = vmatpush2.msra.mxu0 0.0
        %889 = vmatprep.subr.mxu0 0.0
        %890 = vmatpush2.msra.mxu0 0.0
        %891 = vmatprep.subr.mxu0 0.0
        %892 = vmatpush2.msra.mxu0 0.0
        %893 = vmatprep.subr.mxu0 0.0
        %894 = vmatpush2.msra.mxu0 0.0
        %895 = vmatprep.subr.mxu0 0.0
        %896 = vmatpush2.msra.mxu0 0.0
        %897 = vmatprep.subr.mxu0 0.0
        %898 = vmatpush2.msra.mxu0 0.0
        %899 = vmatprep.subr.mxu0 0.0
        %900 = vmatpush2.msra.mxu0 0.0
        %901 = vmatprep.subr.mxu0 0.0
        %902 = vmatpush2.msra.mxu0 0.0
        %903 = vmatprep.subr.mxu0 0.0
        %904 = vmatpush2.msra.mxu0 0.0
        %905 = vmatprep.mubr.f32.mxu0 0.0
        %906 = vmatmul.mubr.f32.gmra.mxu0 %v815
        %v907 = vpop.f32.mrf.mxu0
        %v908 = vadd.f32 %v839, %v907
        %v909 = vpop.f32.mrf.mxu0
        %910 = vdwg.mxu0
        %v911 = vmul.f32 %v538, 0.70710677
        %v912 = vadd.f32 %v908, %v911
        %913 = vst [vmem:[%s527] sm:$0xff] %v912
        %s914 = sand.u32 %s256, 1
        %s915 = scalar_lea.sflag [#allocation4], %s914
        %s916 = sand.u32 %s256, 1
        %s917 = smul.addr %s916, 8
        %s918 = scalar_lea.vmem [#allocation13], %s917
        %s919 = sand.u32 %s284, 1
        %s920 = scalar_lea.sflag [#allocation15], %s919
        %s921 = sand.u32 %s284, 1
        %s922 = smul.addr %s921, 8
        %s923 = scalar_lea.vmem [#allocation14], %s922
        // Predicated region
        $region77: #{tpu_custom_call.1} parent=51 // pred_check
          %p924 = pneg %p266
        $region78: #{tpu_custom_call.1} parent=51 // pred_check_branch
          %926 = sbr.rel (%p924) target = $region80
        $region79: #{tpu_custom_call.1} parent=51 // pred_region
          %s928 = ssub.s32 128, 128
          %929 = vsyncadd %s915, %s928
          %s930 = sadd.s32 %s42, %s41
          %s931 = smul.addr %s930, 128
          %s932 = scalar_lea.hbm %s8, %s931
          %s934 = sshll.u32 %s918, 4
          %s935 = int_to_ptr.vmem [resolvable:$true] %s934
          %937 = dma.vmem_to_hbm [thread:$0]  %s935, 128, %s932, %s915
        $region80: #{tpu_custom_call.1} parent=51 // pred_fallthru
          _
        // Predicated region
        $region81: #{tpu_custom_call.1} parent=51 // pred_check
          %p938 = pneg %p294
        $region82: #{tpu_custom_call.1} parent=51 // pred_check_branch
          %940 = sbr.rel (%p938) target = $region84
        $region83: #{tpu_custom_call.1} parent=51 // pred_region
          %s942 = ssub.s32 128, 128
          %943 = vsyncadd %s920, %s942
          %s944 = sadd.s32 %s42, %s41
          %s945 = smul.addr %s944, 128
          %s946 = scalar_lea.hbm %s9, %s945
          %s948 = sshll.u32 %s923, 4
          %s949 = int_to_ptr.vmem [resolvable:$true] %s948
          %951 = dma.vmem_to_hbm [thread:$0]  %s949, 128, %s946, %s920
        $region84: #{tpu_custom_call.1} parent=51 // pred_fallthru
          _
      $region52: #{tpu_custom_call.1} parent=5 // pred_fallthru
        _
      %p952 = scmp.le.s32.totalorder 2, %s32
      // Predicated region
      $region85: #{tpu_custom_call.1} parent=5 // pred_check
        %p953 = pneg %p952
      $region86: #{tpu_custom_call.1} parent=5 // pred_check_branch
        %955 = sbr.rel (%p953) target = $region88
      $region87: #{tpu_custom_call.1} parent=5 // pred_region
        %s956 = ssub.s32 %s32, 2
        // Predicated region
        $region89: #{tpu_custom_call.1} parent=87 // pred_check
          %p957 = pneg %p272
        $region90: #{tpu_custom_call.1} parent=87 // pred_check_branch
          %959 = sbr.rel (%p957) target = $region92
        $region91: #{tpu_custom_call.1} parent=87 // pred_region
          %s960 = sand.u32 %s257, 1
          %s961 = scalar_lea.sflag [#allocation4], %s960
          %s962 = sand.u32 %s257, 1
          %s963 = smul.addr %s962, 8
          %s964 = scalar_lea.vmem [#allocation13], %s963
          %965 = dma.done %s961, 128
        $region92: #{tpu_custom_call.1} parent=87 // pred_fallthru
          _
        // Predicated region
        $region93: #{tpu_custom_call.1} parent=87 // pred_check
          %p966 = pneg %p300
        $region94: #{tpu_custom_call.1} parent=87 // pred_check_branch
          %968 = sbr.rel (%p966) target = $region96
        $region95: #{tpu_custom_call.1} parent=87 // pred_region
          %s969 = sand.u32 %s285, 1
          %s970 = scalar_lea.sflag [#allocation15], %s969
          %s971 = sand.u32 %s285, 1
          %s972 = smul.addr %s971, 8
          %s973 = scalar_lea.vmem [#allocation14], %s972
          %974 = dma.done %s970, 128
        $region96: #{tpu_custom_call.1} parent=87 // pred_fallthru
          _
      $region88: #{tpu_custom_call.1} parent=5 // pred_fallthru
        _
    $region6: #{tpu_custom_call.1} parent=1 // loop_footer
      %s36 = sadd.s32 1, %s32
    $region7: #{tpu_custom_call.1} parent=1 // loop_footer_branch
      %31 = sbr.rel target = $region3
    $region8: #{tpu_custom_call.1} parent=1 // loop_exit
      _
    %975 = vsyncpa [#allocation3], 1
    %s976 = scalar_lea.sflag [#allocation3], 1
    %977 = vsyncpa %s976, 1
    %978 = vsyncpa [#allocation6], 1
    %s979 = scalar_lea.sflag [#allocation6], 1
    %980 = vsyncpa %s979, 1
    %981 = vsyncpa [#allocation9], 1
    %s982 = scalar_lea.sflag [#allocation9], 1
    %983 = vsyncpa %s982, 1
    %984 = vsyncpa [#allocation12], 1
    %985 = vsyncpa [#allocation4], 1
    %s986 = scalar_lea.sflag [#allocation4], 1
    %987 = vsyncpa %s986, 1
    %988 = vsyncpa [#allocation15], 1
    %s989 = scalar_lea.sflag [#allocation15], 1
    %990 = vsyncpa %s989, 1

</llo_original>
